<compile_context>
chip_gen: v5e
topology: v5e:2x2
jax: 0.10.0
libtpu: 0.0.40
codegen_flags: <defaults>
</compile_context>

<pallas_src>
import functools

import numpy as np

import jax
import jax.numpy as jnp
from jax.experimental import pallas as pl
from jax.experimental.pallas import tpu as pltpu

EPS = 1e-5


# ---------------------------------------------------------------------------
# Fused Pallas kernel: conv3x3+ReLU feature extractor + label/domain heads
# ---------------------------------------------------------------------------
def dann3_fused_kernel(x_ref, tc_ref, bc_ref, w1_ref, p1_ref, w2_ref, p2_ref,
                       w3_ref, b3_ref, label_ref, domain_ref, *, num_classes):
    """All operands are whole-array VMEM blocks (KB scale, single invocation).

    x:  [N, Cin*(H+2)*(W+2)]  bf16   padded NCHW-flat input (read once)
    tc: [Cin*(H+2)*(W+2), F]  bf16   conv-as-Toeplitz weight (F = H*W*Cf, NHWC)
    bc: [1, F]                f32    conv bias broadcast over H*W
    w1: [F, HL+D1]            bf16   concat of label/domain layer-1 weights
    p1: [3, HL+D1]            f32    rows: (bias, gamma, beta)
    w2: [HL+D1, 128]          bf16   block-diag fused layer-2 (96 padded to 128)
    p2: [3, 128]              f32
    w3: [128, NC+1]           bf16   block-diag fused layer-3
    b3: [1, NC+1]             f32
    """

    def bn_relu(h, p_ref):
        # BatchNorm1d training-mode forward, one pass + folded affine.
        mu = jnp.mean(h, axis=0, keepdims=True)
        var = jnp.mean(h * h, axis=0, keepdims=True) - mu * mu
        scale = p_ref[1:2, :] * jax.lax.rsqrt(var + EPS)
        shift = p_ref[2:3, :] - mu * scale
        return jnp.maximum(h * scale + shift, 0.0)

    # Feature extractor: conv3x3 (pad 1) + ReLU as one lane-dense MXU matmul.
    feat = jnp.dot(x_ref[...], tc_ref[...], preferred_element_type=jnp.float32)
    feat = jnp.maximum(feat + bc_ref[...], 0.0)          # [N, F] f32, NHWC-flat

    # Fused head layer 1 (label ++ domain).  GradientReversal fwd = identity.
    h1 = jnp.dot(feat.astype(w1_ref.dtype), w1_ref[...],
                 preferred_element_type=jnp.float32) + p1_ref[0:1, :]
    h1 = bn_relu(h1, p1_ref)

    # Fused (block-diagonal, 128-lane padded) layer 2.
    h2 = jnp.dot(h1.astype(w2_ref.dtype), w2_ref[...],
                 preferred_element_type=jnp.float32) + p2_ref[0:1, :]
    h2 = bn_relu(h2, p2_ref)

    # Fused (block-diagonal) layer 3 -> [N, NC+1] logits.
    logits = jnp.dot(h2.astype(w3_ref.dtype), w3_ref[...],
                     preferred_element_type=jnp.float32) + b3_ref[...]

    # Label softmax (dim=1) over the first num_classes columns, exact division.
    lab = logits[:, :num_classes]
    m = jnp.max(lab, axis=1, keepdims=True)
    e = jnp.exp(lab - m)
    label_ref[...] = (e / jnp.sum(e, axis=1, keepdims=True)).astype(label_ref.dtype)

    # Domain softmax over a single logit is identically 1.0 (skip exp/reduce).
    domain_ref[...] = jnp.ones(domain_ref.shape, domain_ref.dtype)


# ---------------------------------------------------------------------------
# Wrapper
# ---------------------------------------------------------------------------
def dann3_forward(x, lmbda, pk):
    """Forward pass of DANN_3 (lmbda only affects the backward pass)."""
    del lmbda  # GradientReversal forward is identity
    N, Cin, H, W = x.shape
    # Pad once; flatten to NCHW-flat (no transpose, x read once by the kernel).
    xp = jnp.pad(x, ((0, 0), (0, 0), (1, 1), (1, 1)))
    xflat = xp.reshape(N, Cin * (H + 2) * (W + 2)).astype(jnp.bfloat16)

    vm = pl.BlockSpec(memory_space=pltpu.MemorySpace.VMEM)
    args = (xflat, pk["Tconv"], pk["Bconv"], pk["W1f"], pk["P1"],
            pk["W2f"], pk["P2"], pk["W3f"], pk["B3"])
    nc = pk["num_classes"]
    label_out, domain_out = pl.pallas_call(
        functools.partial(dann3_fused_kernel, num_classes=nc),
        out_shape=(
            jax.ShapeDtypeStruct((N, nc), jnp.float32),
            jax.ShapeDtypeStruct((N, 1), jnp.float32),
        ),
        in_specs=[vm for _ in args],
        out_specs=(vm, vm),
    )(*args)
    return label_out, domain_out


# ---------------------------------------------------------------------------
# Parameter init (logical, PyTorch-equivalent basis) + packing for the kernel
# ---------------------------------------------------------------------------
def init_params(key, cin, cf, h, w, hid_l, num_classes, d1, d2):
    F = cf * h * w
    ks = jax.random.split(key, 16)

    def nrm(k, shape, scale=0.05):
        return (scale * jax.random.normal(k, shape)).astype(jnp.float32)

    def row(k, n):
        return nrm(k, (1, n))

    return {
        # feature extractor (synthetic stand-in for model_layers): Conv3x3+ReLU
        "conv_w": nrm(ks[0], (cf, cin, 3, 3)),
        "conv_b": nrm(ks[1], (cf,)),
        # label predictor (weights stored [in, out]; w1 rows in NCHW-flat basis)
        "w1": nrm(ks[2], (F, hid_l)), "b1": row(ks[3], hid_l),
        "g1": jnp.ones((1, hid_l), jnp.float32), "be1": jnp.zeros((1, hid_l), jnp.float32),
        "w2": nrm(ks[4], (hid_l, hid_l)), "b2": row(ks[5], hid_l),
        "g2": jnp.ones((1, hid_l), jnp.float32), "be2": jnp.zeros((1, hid_l), jnp.float32),
        "w3": nrm(ks[6], (hid_l, num_classes)), "b3": row(ks[7], num_classes),
        # domain classifier
        "wd1": nrm(ks[8], (F, d1)), "bd1": row(ks[9], d1),
        "gd1": jnp.ones((1, d1), jnp.float32), "bed1": jnp.zeros((1, d1), jnp.float32),
        "wd2": nrm(ks[10], (d1, d2)), "bd2": row(ks[11], d2),
        "gd2": jnp.ones((1, d2), jnp.float32), "bed2": jnp.zeros((1, d2), jnp.float32),
        "wd3": nrm(ks[12], (d2, 1)), "bd3": row(ks[13], 1),
    }


def _nchw_rows_to_nhwc(w_fc, cf, h, w):
    # w_fc rows are indexed in PyTorch's NCHW .view(-1, C*H*W) order; permute
    # them so (NHWC-flat features) @ w_perm == (NCHW-flat features) @ w_fc.
    out = w_fc.shape[1]
    return w_fc.reshape(cf, h, w, out).transpose(1, 2, 0, 3).reshape(cf * h * w, out)


def _build_conv_toeplitz(conv_w, conv_b, cin, cf, h, w):
    """Dense Toeplitz matrix for conv3x3 (stride 1, pad 1).

    Rows indexed by the padded NCHW-flat input (cin, hp, wp); columns by the
    NHWC-flat output (h, w, cf).  Built once on the host at pack time.
    """
    hp, wp = h + 2, w + 2
    wk = np.asarray(conv_w, dtype=np.float32)               # [Cf, Cin, 3, 3]
    T = np.zeros((cin * hp * wp, h * w * cf), np.float32)
    cin_off = np.arange(cin) * hp * wp
    for ki in range(3):
        for kj in range(3):
            blk = wk[:, :, ki, kj].T                         # [Cin, Cf]
            for hh in range(h):
                for ww in range(w):
                    rows = cin_off + (hh + ki) * wp + (ww + kj)
                    c0 = (hh * w + ww) * cf
                    T[rows, c0:c0 + cf] += blk
    b_row = np.tile(np.asarray(conv_b, np.float32), h * w).reshape(1, h * w * cf)
    return jnp.asarray(T, jnp.bfloat16), jnp.asarray(b_row, jnp.float32)


def pack_params(p, cin, cf, h, w):
    hid_l = p["w2"].shape[0]
    d1 = p["wd2"].shape[0]
    d2 = p["wd2"].shape[1]
    nc = p["w3"].shape[1]

    Tconv, Bconv = _build_conv_toeplitz(p["conv_w"], p["conv_b"], cin, cf, h, w)

    # Fused layer 1: concat label/domain along the output dim (rows permuted
    # once to the NHWC-flat feature basis produced by the Toeplitz conv).
    w1 = _nchw_rows_to_nhwc(p["w1"], cf, h, w)
    wd1 = _nchw_rows_to_nhwc(p["wd1"], cf, h, w)
    W1f = jnp.concatenate([w1, wd1], axis=1).astype(jnp.bfloat16)      # [F, HL+D1]
    P1 = jnp.concatenate([
        jnp.concatenate([p["b1"], p["bd1"]], axis=1),
        jnp.concatenate([p["g1"], p["gd1"]], axis=1),
        jnp.concatenate([p["be1"], p["bed1"]], axis=1)], axis=0).astype(jnp.float32)

    # Fused layer 2: block-diagonal, output width padded up to a 128-lane tile.
    fused2 = hid_l + d2
    fused2_pad = max(128, ((fused2 + 127) // 128) * 128)
    pad = fused2_pad - fused2
    W2f = jnp.zeros((hid_l + d1, fused2_pad), jnp.float32)
    W2f = W2f.at[:hid_l, :hid_l].set(p["w2"]).at[hid_l:, hid_l:fused2].set(p["wd2"])
    W2f = W2f.astype(jnp.bfloat16)
    z = jnp.zeros((1, pad), jnp.float32)
    P2 = jnp.concatenate([
        jnp.concatenate([p["b2"], p["bd2"], z], axis=1),
        jnp.concatenate([p["g2"], p["gd2"], z], axis=1),   # gamma=0 on pad cols
        jnp.concatenate([p["be2"], p["bed2"], z], axis=1)], axis=0).astype(jnp.float32)

    # Fused layer 3: block-diagonal (label logits + single domain logit).
    W3f = jnp.zeros((fused2_pad, nc + 1), jnp.float32)
    W3f = W3f.at[:hid_l, :nc].set(p["w3"]).at[hid_l:fused2, nc:].set(p["wd3"])
    W3f = W3f.astype(jnp.bfloat16)
    B3 = jnp.concatenate([p["b3"], p["bd3"]], axis=1).astype(jnp.float32)

    return {"Tconv": Tconv, "Bconv": Bconv,
            "W1f": W1f, "P1": P1, "W2f": W2f, "P2": P2, "W3f": W3f, "B3": B3,
            "num_classes": nc}


# ---------------------------------------------------------------------------
# Pure-JAX reference of the original PyTorch dataflow (for validation)
# ---------------------------------------------------------------------------
def _mm(a, b):
    return jnp.dot(a.astype(jnp.bfloat16), b.astype(jnp.bfloat16),
                   preferred_element_type=jnp.float32)


def _bn_relu_ref(h, g, b):
    mu = jnp.mean(h, axis=0, keepdims=True)
    var = jnp.mean((h - mu) ** 2, axis=0, keepdims=True)
    return jnp.maximum((h - mu) * jax.lax.rsqrt(var + EPS) * g + b, 0.0)


def dann3_reference(x, p):
    out = jax.lax.conv_general_dilated(
        x.astype(jnp.bfloat16), p["conv_w"].astype(jnp.bfloat16),
        window_strides=(1, 1), padding=((1, 1), (1, 1)),
        dimension_numbers=("NCHW", "OIHW", "NCHW"),
        preferred_element_type=jnp.float32)
    out = jnp.maximum(out + p["conv_b"].reshape(1, -1, 1, 1), 0.0)
    feat = out.reshape(out.shape[0], -1)             # NCHW-flat .view(-1, C*H*W)
    # label predictor
    hl = _bn_relu_ref(_mm(feat, p["w1"]) + p["b1"], p["g1"], p["be1"])
    hl = _bn_relu_ref(_mm(hl, p["w2"]) + p["b2"], p["g2"], p["be2"])
    lab = jax.nn.softmax(_mm(hl, p["w3"]) + p["b3"], axis=1)
    # domain classifier (GradientReversal forward is identity)
    hd = _bn_relu_ref(_mm(feat, p["wd1"]) + p["bd1"], p["gd1"], p["bed1"])
    hd = _bn_relu_ref(_mm(hd, p["wd2"]) + p["bd2"], p["gd2"], p["bed2"])
    dom = jax.nn.softmax(_mm(hd, p["wd3"]) + p["bd3"], axis=1)
    return lab, dom


# ---------------------------------------------------------------------------
if __name__ == "__main__":
    # small shapes consistent with the module structure
    N, CIN, H, W = 4, 4, 8, 8          # input [N, Cin, H, W] (NCHW)
    CF = 8                             # feature channels -> F = 8*8*8 = 512
    HID_L, NUM_CLASSES = 64, 3         # label predictor (512 -> 64 -> 64 -> 3)
    D1, D2 = 128, 32                   # domain classifier (512 -> 128 -> 32 -> 1)

    key = jax.random.PRNGKey(0)
    kx, kp = jax.random.split(key)
    x = jax.random.normal(kx, (N, CIN, H, W), dtype=jnp.float32)
    params = init_params(kp, CIN, CF, H, W, HID_L, NUM_CLASSES, D1, D2)
    packed = pack_params(params, CIN, CF, H, W)
    lmbda = 0.5

    label_out, domain_out = jax.jit(
        lambda xx: dann3_forward(xx, lmbda, packed)
    )(x)
    jax.block_until_ready((label_out, domain_out))

    lab_ref, dom_ref = dann3_reference(x, params)

    assert label_out.shape == (N, NUM_CLASSES)
    assert domain_out.shape == (N, 1)
    # softmax(dim=1) rows sum to 1 (exact division); size-1 softmax is 1
    assert bool(jnp.allclose(jnp.sum(label_out, axis=1), 1.0, atol=1e-4))
    assert bool(jnp.allclose(domain_out, 1.0, atol=1e-6))
    # match the pure-JAX reference of the original PyTorch dataflow
    assert bool(jnp.allclose(label_out, lab_ref, atol=2e-2))
    assert bool(jnp.allclose(domain_out, dom_ref, atol=1e-6))

    print("KERNEL_OK")
</pallas_src>

<mosaic_0001>
module attributes {stable_mosaic.version = 11 : i64} {
  func.func @dann3_fused_kernel(%arg0: memref<4x400xbf16, #tpu.memory_space<vmem>>, %arg1: memref<400x512xbf16, #tpu.memory_space<vmem>>, %arg2: memref<1x512xf32, #tpu.memory_space<vmem>>, %arg3: memref<512x192xbf16, #tpu.memory_space<vmem>>, %arg4: memref<3x192xf32, #tpu.memory_space<vmem>>, %arg5: memref<192x128xbf16, #tpu.memory_space<vmem>>, %arg6: memref<3x128xf32, #tpu.memory_space<vmem>>, %arg7: memref<128x4xbf16, #tpu.memory_space<vmem>>, %arg8: memref<1x4xf32, #tpu.memory_space<vmem>>, %arg9: memref<4x3xf32, #tpu.memory_space<vmem>>, %arg10: memref<4x1xf32, #tpu.memory_space<vmem>>) attributes {dimension_semantics = [], scalar_prefetch = 0 : i64, scratch_operands = 0 : i64, tpu.core_type = #tpu.core_type<tc>} {
    %c0 = arith.constant 0 : index
    %c0_0 = arith.constant 0 : index
    %0 = vector.load %arg0[%c0, %c0_0] : memref<4x400xbf16, #tpu.memory_space<vmem>>, vector<4x400xbf16>
    %c0_1 = arith.constant 0 : index
    %c0_2 = arith.constant 0 : index
    %1 = vector.load %arg1[%c0_1, %c0_2] : memref<400x512xbf16, #tpu.memory_space<vmem>>, vector<400x512xbf16>
    %cst = arith.constant dense<0.000000e+00> : vector<4x512xf32>
    %2 = tpu.matmul %0, %1, %cst {dimension_numbers = #tpu.dot_dimension_numbers<[1], [0], [0], [1], [0, 0, 1, 1], [], []>} : vector<4x400xbf16>, vector<400x512xbf16>, vector<4x512xf32> -> vector<4x512xf32>
    %c0_3 = arith.constant 0 : index
    %c0_4 = arith.constant 0 : index
    %3 = vector.load %arg2[%c0_3, %c0_4] : memref<1x512xf32, #tpu.memory_space<vmem>>, vector<1x512xf32>
    %4 = vector.broadcast %3 : vector<1x512xf32> to vector<4x512xf32>
    %5 = arith.addf %2, %4 : vector<4x512xf32>
    %cst_5 = arith.constant 0.000000e+00 : f32
    %6 = vector.broadcast %cst_5 : f32 to vector<4x512xf32>
    %7 = arith.maximumf %5, %6 : vector<4x512xf32>
    %8 = arith.truncf %7 : vector<4x512xf32> to vector<4x512xbf16>
    %c0_6 = arith.constant 0 : index
    %c0_7 = arith.constant 0 : index
    %9 = vector.load %arg3[%c0_6, %c0_7] : memref<512x192xbf16, #tpu.memory_space<vmem>>, vector<512x192xbf16>
    %cst_8 = arith.constant dense<0.000000e+00> : vector<4x192xf32>
    %10 = tpu.matmul %8, %9, %cst_8 {dimension_numbers = #tpu.dot_dimension_numbers<[1], [0], [0], [1], [0, 0, 1, 1], [], []>} : vector<4x512xbf16>, vector<512x192xbf16>, vector<4x192xf32> -> vector<4x192xf32>
    %c0_9 = arith.constant 0 : index
    %c0_10 = arith.constant 0 : index
    %11 = vector.load %arg4[%c0_9, %c0_10] : memref<3x192xf32, #tpu.memory_space<vmem>>, vector<1x192xf32>
    %12 = vector.broadcast %11 : vector<1x192xf32> to vector<4x192xf32>
    %13 = arith.addf %10, %12 : vector<4x192xf32>
    %cst_11 = arith.constant dense<0.000000e+00> : vector<192xf32>
    %14 = vector.multi_reduction <add>, %13, %cst_11 [0] : vector<4x192xf32> to vector<192xf32>
    %15 = vector.shape_cast %14 : vector<192xf32> to vector<1x192xf32>
    %cst_12 = arith.constant 4.000000e+00 : f32
    %16 = vector.broadcast %cst_12 : f32 to vector<1x192xf32>
    %17 = arith.divf %15, %16 : vector<1x192xf32>
    %18 = arith.mulf %13, %13 : vector<4x192xf32>
    %cst_13 = arith.constant dense<0.000000e+00> : vector<192xf32>
    %19 = vector.multi_reduction <add>, %18, %cst_13 [0] : vector<4x192xf32> to vector<192xf32>
    %20 = vector.shape_cast %19 : vector<192xf32> to vector<1x192xf32>
    %cst_14 = arith.constant 4.000000e+00 : f32
    %21 = vector.broadcast %cst_14 : f32 to vector<1x192xf32>
    %22 = arith.divf %20, %21 : vector<1x192xf32>
    %23 = arith.mulf %17, %17 : vector<1x192xf32>
    %24 = arith.subf %22, %23 : vector<1x192xf32>
    %c1 = arith.constant 1 : index
    %c0_15 = arith.constant 0 : index
    %25 = vector.load %arg4[%c1, %c0_15] : memref<3x192xf32, #tpu.memory_space<vmem>>, vector<1x192xf32>
    %cst_16 = arith.constant 9.99999974E-6 : f32
    %26 = vector.broadcast %cst_16 : f32 to vector<1x192xf32>
    %27 = arith.addf %24, %26 : vector<1x192xf32>
    %28 = math.rsqrt %27 : vector<1x192xf32>
    %29 = arith.mulf %25, %28 : vector<1x192xf32>
    %c2 = arith.constant 2 : index
    %c0_17 = arith.constant 0 : index
    %30 = vector.load %arg4[%c2, %c0_17] : memref<3x192xf32, #tpu.memory_space<vmem>>, vector<1x192xf32>
    %31 = arith.mulf %17, %29 : vector<1x192xf32>
    %32 = arith.subf %30, %31 : vector<1x192xf32>
    %33 = vector.broadcast %29 : vector<1x192xf32> to vector<4x192xf32>
    %34 = arith.mulf %13, %33 : vector<4x192xf32>
    %35 = vector.broadcast %32 : vector<1x192xf32> to vector<4x192xf32>
    %36 = arith.addf %34, %35 : vector<4x192xf32>
    %cst_18 = arith.constant 0.000000e+00 : f32
    %37 = vector.broadcast %cst_18 : f32 to vector<4x192xf32>
    %38 = arith.maximumf %36, %37 : vector<4x192xf32>
    %39 = arith.truncf %38 : vector<4x192xf32> to vector<4x192xbf16>
    %c0_19 = arith.constant 0 : index
    %c0_20 = arith.constant 0 : index
    %40 = vector.load %arg5[%c0_19, %c0_20] : memref<192x128xbf16, #tpu.memory_space<vmem>>, vector<192x128xbf16>
    %cst_21 = arith.constant dense<0.000000e+00> : vector<4x128xf32>
    %41 = tpu.matmul %39, %40, %cst_21 {dimension_numbers = #tpu.dot_dimension_numbers<[1], [0], [0], [1], [0, 0, 1, 1], [], []>} : vector<4x192xbf16>, vector<192x128xbf16>, vector<4x128xf32> -> vector<4x128xf32>
    %c0_22 = arith.constant 0 : index
    %c0_23 = arith.constant 0 : index
    %42 = vector.load %arg6[%c0_22, %c0_23] : memref<3x128xf32, #tpu.memory_space<vmem>>, vector<1x128xf32>
    %43 = vector.broadcast %42 : vector<1x128xf32> to vector<4x128xf32>
    %44 = arith.addf %41, %43 : vector<4x128xf32>
    %cst_24 = arith.constant dense<0.000000e+00> : vector<128xf32>
    %45 = vector.multi_reduction <add>, %44, %cst_24 [0] : vector<4x128xf32> to vector<128xf32>
    %46 = vector.shape_cast %45 : vector<128xf32> to vector<1x128xf32>
    %cst_25 = arith.constant 4.000000e+00 : f32
    %47 = vector.broadcast %cst_25 : f32 to vector<1x128xf32>
    %48 = arith.divf %46, %47 : vector<1x128xf32>
    %49 = arith.mulf %44, %44 : vector<4x128xf32>
    %cst_26 = arith.constant dense<0.000000e+00> : vector<128xf32>
    %50 = vector.multi_reduction <add>, %49, %cst_26 [0] : vector<4x128xf32> to vector<128xf32>
    %51 = vector.shape_cast %50 : vector<128xf32> to vector<1x128xf32>
    %cst_27 = arith.constant 4.000000e+00 : f32
    %52 = vector.broadcast %cst_27 : f32 to vector<1x128xf32>
    %53 = arith.divf %51, %52 : vector<1x128xf32>
    %54 = arith.mulf %48, %48 : vector<1x128xf32>
    %55 = arith.subf %53, %54 : vector<1x128xf32>
    %c1_28 = arith.constant 1 : index
    %c0_29 = arith.constant 0 : index
    %56 = vector.load %arg6[%c1_28, %c0_29] : memref<3x128xf32, #tpu.memory_space<vmem>>, vector<1x128xf32>
    %cst_30 = arith.constant 9.99999974E-6 : f32
    %57 = vector.broadcast %cst_30 : f32 to vector<1x128xf32>
    %58 = arith.addf %55, %57 : vector<1x128xf32>
    %59 = math.rsqrt %58 : vector<1x128xf32>
    %60 = arith.mulf %56, %59 : vector<1x128xf32>
    %c2_31 = arith.constant 2 : index
    %c0_32 = arith.constant 0 : index
    %61 = vector.load %arg6[%c2_31, %c0_32] : memref<3x128xf32, #tpu.memory_space<vmem>>, vector<1x128xf32>
    %62 = arith.mulf %48, %60 : vector<1x128xf32>
    %63 = arith.subf %61, %62 : vector<1x128xf32>
    %64 = vector.broadcast %60 : vector<1x128xf32> to vector<4x128xf32>
    %65 = arith.mulf %44, %64 : vector<4x128xf32>
    %66 = vector.broadcast %63 : vector<1x128xf32> to vector<4x128xf32>
    %67 = arith.addf %65, %66 : vector<4x128xf32>
    %cst_33 = arith.constant 0.000000e+00 : f32
    %68 = vector.broadcast %cst_33 : f32 to vector<4x128xf32>
    %69 = arith.maximumf %67, %68 : vector<4x128xf32>
    %70 = arith.truncf %69 : vector<4x128xf32> to vector<4x128xbf16>
    %c0_34 = arith.constant 0 : index
    %c0_35 = arith.constant 0 : index
    %71 = vector.load %arg7[%c0_34, %c0_35] : memref<128x4xbf16, #tpu.memory_space<vmem>>, vector<128x4xbf16>
    %cst_36 = arith.constant dense<0.000000e+00> : vector<4x4xf32>
    %72 = tpu.matmul %70, %71, %cst_36 {dimension_numbers = #tpu.dot_dimension_numbers<[1], [0], [0], [1], [0, 0, 1, 1], [], []>} : vector<4x128xbf16>, vector<128x4xbf16>, vector<4x4xf32> -> vector<4x4xf32>
    %c0_37 = arith.constant 0 : index
    %c0_38 = arith.constant 0 : index
    %73 = vector.load %arg8[%c0_37, %c0_38] : memref<1x4xf32, #tpu.memory_space<vmem>>, vector<1x4xf32>
    %74 = vector.broadcast %73 : vector<1x4xf32> to vector<4x4xf32>
    %75 = arith.addf %72, %74 : vector<4x4xf32>
    %76 = vector.extract_strided_slice %75 {offsets = [0, 0], sizes = [4, 3], strides = [1, 1]} : vector<4x4xf32> to vector<4x3xf32>
    %cst_39 = arith.constant dense<0xFF800000> : vector<4xf32>
    %77 = vector.multi_reduction <maximumf>, %76, %cst_39 [1] : vector<4x3xf32> to vector<4xf32>
    %78 = vector.shape_cast %77 : vector<4xf32> to vector<4x1xf32>
    %79 = vector.broadcast %78 : vector<4x1xf32> to vector<4x3xf32>
    %80 = arith.subf %76, %79 : vector<4x3xf32>
    %81 = math.exp %80 : vector<4x3xf32>
    %cst_40 = arith.constant dense<0.000000e+00> : vector<4xf32>
    %82 = vector.multi_reduction <add>, %81, %cst_40 [1] : vector<4x3xf32> to vector<4xf32>
    %83 = vector.shape_cast %82 : vector<4xf32> to vector<4x1xf32>
    %84 = vector.broadcast %83 : vector<4x1xf32> to vector<4x3xf32>
    %85 = arith.divf %81, %84 : vector<4x3xf32>
    %c0_41 = arith.constant 0 : index
    %c0_42 = arith.constant 0 : index
    %86 = vector.load %arg9[%c0_41, %c0_42] : memref<4x3xf32, #tpu.memory_space<vmem>>, vector<4x3xf32>
    tpu.vector_store %arg9[%c0_41, %c0_42], %85 {strides = array<i32>} : memref<4x3xf32, #tpu.memory_space<vmem>>, vector<4x3xf32>,
    %cst_43 = arith.constant 1.000000e+00 : f32
    %87 = vector.broadcast %cst_43 : f32 to vector<4x1xf32>
    %c0_44 = arith.constant 0 : index
    %c0_45 = arith.constant 0 : index
    %88 = vector.load %arg10[%c0_44, %c0_45] : memref<4x1xf32, #tpu.memory_space<vmem>>, vector<4x1xf32>
    tpu.vector_store %arg10[%c0_44, %c0_45], %87 {strides = array<i32>} : memref<4x1xf32, #tpu.memory_space<vmem>>, vector<4x1xf32>,
    return
  }
}

</mosaic_0001>

<llo_original>
// kernel: _lambda_.1
$region0: #{_lambda_.1}
  #allocation0 [shape = 'u32[]', space=smem, size = 0x4, offset = 0x4, fixed_abs, tag = 'smem constant byte address 0x4 - core index']
  #allocation1 [shape = 'u32[72,128]{1,0:T(1,128)}', space=vmem, size = 0x9000, scoped, tag = 'internal scratch']
  %s0 = inlined_call_operand.vmem [shape: bf16[4,400], index: 0, kind: input, shape index: {}]
  %s1 = inlined_call_operand.hbm [shape: bf16[400,512], index: 1, kind: input, shape index: {}]
  %s2 = inlined_call_operand.hbm [shape: f32[1,512], index: 2, kind: input, shape index: {}]
  %s3 = inlined_call_operand.vmem [shape: bf16[512,192], index: 3, kind: input, shape index: {}]
  %s4 = inlined_call_operand.vmem [shape: f32[3,192], index: 4, kind: input, shape index: {}]
  %s5 = inlined_call_operand.hbm [shape: bf16[192,128], index: 5, kind: input, shape index: {}]
  %s6 = inlined_call_operand.vmem [shape: f32[3,128], index: 6, kind: input, shape index: {}]
  %s7 = inlined_call_operand.hbm [shape: bf16[128,4], index: 7, kind: input, shape index: {}]
  %s8 = inlined_call_operand.vmem [shape: f32[1,4], index: 8, kind: input, shape index: {}]
  %s9 = inlined_call_operand.hbm [shape: f32[4,3], index: 9, kind: output, shape index: {0}]
  %s10 = inlined_call_operand.vmem [shape: f32[4,1], index: 10, kind: output, shape index: {1}]
  %11 = xla_tuple %s9, %s10
  %s12 = sld [smem:[#allocation0]]
  $region70: #{_lambda_.1} parent=0
    _
  %s14 = ssub.s32 1, %s12
  %s15 = scalar_select 0, %s14, %s12
  $region1: #{_lambda_.1} parent=0
    #allocation2 [shape = 'u8[409600]{0}', space=vmem, size = 0x64000, scoped, tag = 'input window, operand 1, single buffered']
    #allocation3 [shape = 's32[1]{0}', space=sflag, size = 0x4, scoped, tag = 'scoped memory for _lambda_.1']
    #allocation4 [shape = 's32[1]{0}', space=sflag, size = 0x4, scoped, tag = 'scoped memory for _lambda_.1']
    #allocation5 [shape = 'u8[2048]{0}', space=vmem, size = 0x800, scoped, tag = 'input window, operand 2, single buffered']
    #allocation6 [shape = 's32[1]{0}', space=sflag, size = 0x4, scoped, tag = 'scoped memory for _lambda_.1']
    #allocation7 [shape = 'u8[49152]{0}', space=vmem, size = 0xc000, scoped, tag = 'input window, operand 5, single buffered']
    #allocation8 [shape = 'u8[32768]{0}', space=vmem, size = 0x8000, scoped, tag = 'input window, operand 7, single buffered']
    #allocation9 [shape = 's32[1]{0}', space=sflag, size = 0x4, scoped, tag = 'scoped memory for _lambda_.1']
    #allocation10 [shape = 'u8[2048]{0}', space=vmem, size = 0x800, scoped, tag = 'output window, operand 0, single buffered']
    %16 = vsyncpa [#allocation3], 0
    %17 = vsyncpa [#allocation6], 0
    %18 = vsyncpa [#allocation9], 0
    %19 = vsyncpa [#allocation4], 0
    // Predicated region
    $region2: #{_lambda_.1} parent=1 // pred_check
      _
    $region3: #{_lambda_.1} parent=1 // pred_check_branch
      %21 = sbr.rel (0) target = $region5
    $region4: #{_lambda_.1} parent=1 // pred_region
      _
    $region5: #{_lambda_.1} parent=1 // pred_fallthru
      _
    // Predicated region
    $region6: #{_lambda_.1} parent=1 // pred_check
      _
    $region7: #{_lambda_.1} parent=1 // pred_check_branch
      %23 = sbr.rel (0) target = $region9
    $region8: #{_lambda_.1} parent=1 // pred_region
      %25 = vsyncadd [#allocation3], 0
      %s26 = sshll.u32 %s1, 4
      %s27 = int_to_ptr.hbm [resolvable:$true] %s26
      %s28 = sshll.u32 [#allocation2], 4
      %s29 = int_to_ptr.vmem [resolvable:$true] %s28
      %34 = dma.hbm_to_vmem [thread:$0]  %s27, 12800, %s29, [#allocation3], 256, 256, 16
    $region9: #{_lambda_.1} parent=1 // pred_fallthru
      _
    // Predicated region
    $region10: #{_lambda_.1} parent=1 // pred_check
      _
    $region11: #{_lambda_.1} parent=1 // pred_check_branch
      %36 = sbr.rel (0) target = $region13
    $region12: #{_lambda_.1} parent=1 // pred_region
      %38 = vsyncadd [#allocation6], 0
      %s40 = sshll.u32 %s2, 4
      %s41 = int_to_ptr.hbm [resolvable:$true] %s40
      %s42 = sshll.u32 [#allocation5], 4
      %s43 = int_to_ptr.vmem [resolvable:$true] %s42
      %45 = dma.hbm_to_vmem [thread:$0]  %s41, 64, %s43, [#allocation6]
    $region13: #{_lambda_.1} parent=1 // pred_fallthru
      _
    // Predicated region
    $region14: #{_lambda_.1} parent=1 // pred_check
      _
    $region15: #{_lambda_.1} parent=1 // pred_check_branch
      %47 = sbr.rel (0) target = $region17
    $region16: #{_lambda_.1} parent=1 // pred_region
      _
    $region17: #{_lambda_.1} parent=1 // pred_fallthru
      _
    // Predicated region
    $region18: #{_lambda_.1} parent=1 // pred_check
      _
    $region19: #{_lambda_.1} parent=1 // pred_check_branch
      %49 = sbr.rel (0) target = $region21
    $region20: #{_lambda_.1} parent=1 // pred_region
      _
    $region21: #{_lambda_.1} parent=1 // pred_fallthru
      _
    // Predicated region
    $region22: #{_lambda_.1} parent=1 // pred_check
      _
    $region23: #{_lambda_.1} parent=1 // pred_check_branch
      %51 = sbr.rel (0) target = $region25
    $region24: #{_lambda_.1} parent=1 // pred_region
      %53 = vsyncadd [#allocation6], 0
      %s54 = sshll.u32 %s5, 4
      %s55 = int_to_ptr.hbm [resolvable:$true] %s54
      %s56 = sshll.u32 [#allocation7], 4
      %s57 = int_to_ptr.vmem [resolvable:$true] %s56
      %62 = dma.hbm_to_vmem [thread:$0]  %s55, 1536, %s57, [#allocation6], 64, 64, 4
    $region25: #{_lambda_.1} parent=1 // pred_fallthru
      _
    // Predicated region
    $region26: #{_lambda_.1} parent=1 // pred_check
      _
    $region27: #{_lambda_.1} parent=1 // pred_check_branch
      %64 = sbr.rel (0) target = $region29
    $region28: #{_lambda_.1} parent=1 // pred_region
      _
    $region29: #{_lambda_.1} parent=1 // pred_fallthru
      _
    // Predicated region
    $region30: #{_lambda_.1} parent=1 // pred_check
      _
    $region31: #{_lambda_.1} parent=1 // pred_check_branch
      %66 = sbr.rel (0) target = $region33
    $region32: #{_lambda_.1} parent=1 // pred_region
      %68 = vsyncadd [#allocation9], 0
      %s69 = sshll.u32 %s7, 4
      %s70 = int_to_ptr.hbm [resolvable:$true] %s69
      %s71 = sshll.u32 [#allocation8], 4
      %s72 = int_to_ptr.vmem [resolvable:$true] %s71
      %77 = dma.hbm_to_vmem [thread:$0]  %s70, 1024, %s72, [#allocation9], 64, 64, 4
    $region33: #{_lambda_.1} parent=1 // pred_fallthru
      _
    // Predicated region
    $region34: #{_lambda_.1} parent=1 // pred_check
      _
    $region35: #{_lambda_.1} parent=1 // pred_check_branch
      %79 = sbr.rel (0) target = $region37
    $region36: #{_lambda_.1} parent=1 // pred_region
      _
    $region37: #{_lambda_.1} parent=1 // pred_fallthru
      _
    // Predicated region
    $region38: #{_lambda_.1} parent=1 // pred_check
      _
    $region39: #{_lambda_.1} parent=1 // pred_check_branch
      %81 = sbr.rel (0) target = $region41
    $region40: #{_lambda_.1} parent=1 // pred_region
      %83 = dma.done [#allocation3], 12800
    $region41: #{_lambda_.1} parent=1 // pred_fallthru
      _
    // Predicated region
    $region42: #{_lambda_.1} parent=1 // pred_check
      _
    $region43: #{_lambda_.1} parent=1 // pred_check_branch
      %85 = sbr.rel (0) target = $region45
    $region44: #{_lambda_.1} parent=1 // pred_region
      %87 = dma.done [#allocation6], 64
    $region45: #{_lambda_.1} parent=1 // pred_fallthru
      _
    // Predicated region
    $region46: #{_lambda_.1} parent=1 // pred_check
      _
    $region47: #{_lambda_.1} parent=1 // pred_check_branch
      %89 = sbr.rel (0) target = $region49
    $region48: #{_lambda_.1} parent=1 // pred_region
      %91 = dma.done [#allocation6], 1536
    $region49: #{_lambda_.1} parent=1 // pred_fallthru
      _
    // Predicated region
    $region50: #{_lambda_.1} parent=1 // pred_check
      _
    $region51: #{_lambda_.1} parent=1 // pred_check_branch
      %93 = sbr.rel (0) target = $region53
    $region52: #{_lambda_.1} parent=1 // pred_region
      %95 = dma.done [#allocation9], 1024
    $region53: #{_lambda_.1} parent=1 // pred_fallthru
      _
    %v97 = vld [vmem:[%s0] sm:$0xff]
    %v98 = vld [vmem:[#allocation2] sm:$0xff]
    %v99 = vld [vmem:[#allocation2 + $0x8] sm:$0xff]
    %v100 = vld [vmem:[#allocation2 + $0x10] sm:$0xff]
    %v101 = vld [vmem:[#allocation2 + $0x18] sm:$0xff]
    %v102 = vld [vmem:[#allocation2 + $0x20] sm:$0xff]
    %v103 = vld [vmem:[#allocation2 + $0x28] sm:$0xff]
    %v104 = vld [vmem:[#allocation2 + $0x30] sm:$0xff]
    %v105 = vld [vmem:[#allocation2 + $0x38] sm:$0xff]
    %v106 = vld [vmem:[#allocation2 + $0x40] sm:$0xff]
    %v107 = vld [vmem:[#allocation2 + $0x48] sm:$0xff]
    %v108 = vld [vmem:[#allocation2 + $0x50] sm:$0xff]
    %v109 = vld [vmem:[#allocation2 + $0x58] sm:$0xff]
    %v110 = vld [vmem:[#allocation2 + $0x60] sm:$0xff]
    %v111 = vld [vmem:[#allocation2 + $0x68] sm:$0xff]
    %v112 = vld [vmem:[#allocation2 + $0x70] sm:$0xff]
    %v113 = vld [vmem:[#allocation2 + $0x78] sm:$0xff]
    %v114 = vld [vmem:[#allocation2 + $0x80] sm:$0xff]
    %v115 = vld [vmem:[#allocation2 + $0x88] sm:$0xff]
    %v116 = vld [vmem:[#allocation2 + $0x90] sm:$0xff]
    %v117 = vld [vmem:[#allocation2 + $0x98] sm:$0xff]
    %v118 = vld [vmem:[#allocation2 + $0xa0] sm:$0xff]
    %v119 = vld [vmem:[#allocation2 + $0xa8] sm:$0xff]
    %v120 = vld [vmem:[#allocation2 + $0xb0] sm:$0xff]
    %v121 = vld [vmem:[#allocation2 + $0xb8] sm:$0xff]
    %v122 = vld [vmem:[#allocation2 + $0xc0] sm:$0xff]
    %v123 = vld [vmem:[#allocation2 + $0xc8] sm:$0xff]
    %v124 = vld [vmem:[#allocation2 + $0xd0] sm:$0xff]
    %v125 = vld [vmem:[#allocation2 + $0xd8] sm:$0xff]
    %v126 = vld [vmem:[#allocation2 + $0xe0] sm:$0xff]
    %v127 = vld [vmem:[#allocation2 + $0xe8] sm:$0xff]
    %v128 = vld [vmem:[#allocation2 + $0xf0] sm:$0xff]
    %v129 = vld [vmem:[#allocation2 + $0xf8] sm:$0xff]
    %v130 = vld [vmem:[#allocation2 + $0x100] sm:$0xff]
    %v131 = vld [vmem:[#allocation2 + $0x108] sm:$0xff]
    %v132 = vld [vmem:[#allocation2 + $0x110] sm:$0xff]
    %v133 = vld [vmem:[#allocation2 + $0x118] sm:$0xff]
    %v134 = vld [vmem:[#allocation2 + $0x120] sm:$0xff]
    %v135 = vld [vmem:[#allocation2 + $0x128] sm:$0xff]
    %v136 = vld [vmem:[#allocation2 + $0x130] sm:$0xff]
    %v137 = vld [vmem:[#allocation2 + $0x138] sm:$0xff]
    %v138 = vld [vmem:[#allocation2 + $0x140] sm:$0xff]
    %v139 = vld [vmem:[#allocation2 + $0x148] sm:$0xff]
    %v140 = vld [vmem:[#allocation2 + $0x150] sm:$0xff]
    %v141 = vld [vmem:[#allocation2 + $0x158] sm:$0xff]
    %v142 = vld [vmem:[#allocation2 + $0x160] sm:$0xff]
    %v143 = vld [vmem:[#allocation2 + $0x168] sm:$0xff]
    %v144 = vld [vmem:[#allocation2 + $0x170] sm:$0xff]
    %v145 = vld [vmem:[#allocation2 + $0x178] sm:$0xff]
    %v146 = vld [vmem:[#allocation2 + $0x180] sm:$0xff]
    %v147 = vld [vmem:[#allocation2 + $0x188] sm:$0xff]
    %v148 = vld [vmem:[#allocation2 + $0x190] sm:$0xff]
    %v149 = vld [vmem:[#allocation2 + $0x198] sm:$0xff]
    %v150 = vld [vmem:[#allocation2 + $0x1a0] sm:$0xff]
    %v151 = vld [vmem:[#allocation2 + $0x1a8] sm:$0xff]
    %v152 = vld [vmem:[#allocation2 + $0x1b0] sm:$0xff]
    %v153 = vld [vmem:[#allocation2 + $0x1b8] sm:$0xff]
    %v154 = vld [vmem:[#allocation2 + $0x1c0] sm:$0xff]
    %v155 = vld [vmem:[#allocation2 + $0x1c8] sm:$0xff]
    %v156 = vld [vmem:[#allocation2 + $0x1d0] sm:$0xff]
    %v157 = vld [vmem:[#allocation2 + $0x1d8] sm:$0xff]
    %v158 = vld [vmem:[#allocation2 + $0x1e0] sm:$0xff]
    %v159 = vld [vmem:[#allocation2 + $0x1e8] sm:$0xff]
    %v160 = vld [vmem:[#allocation2 + $0x1f0] sm:$0xff]
    %v161 = vld [vmem:[#allocation2 + $0x1f8] sm:$0xff]
    %v162 = vld [vmem:[#allocation2 + $0x200] sm:$0xff]
    %v163 = vld [vmem:[#allocation2 + $0x208] sm:$0xff]
    %v164 = vld [vmem:[#allocation2 + $0x210] sm:$0xff]
    %v165 = vld [vmem:[#allocation2 + $0x218] sm:$0xff]
    %v166 = vld [vmem:[#allocation2 + $0x220] sm:$0xff]
    %v167 = vld [vmem:[#allocation2 + $0x228] sm:$0xff]
    %v168 = vld [vmem:[#allocation2 + $0x230] sm:$0xff]
    %v169 = vld [vmem:[#allocation2 + $0x238] sm:$0xff]
    %v170 = vld [vmem:[#allocation2 + $0x240] sm:$0xff]
    %v171 = vld [vmem:[#allocation2 + $0x248] sm:$0xff]
    %v172 = vld [vmem:[#allocation2 + $0x250] sm:$0xff]
    %v173 = vld [vmem:[#allocation2 + $0x258] sm:$0xff]
    %v174 = vld [vmem:[#allocation2 + $0x260] sm:$0xff]
    %v175 = vld [vmem:[#allocation2 + $0x268] sm:$0xff]
    %v176 = vld [vmem:[#allocation2 + $0x270] sm:$0xff]
    %v177 = vld [vmem:[#allocation2 + $0x278] sm:$0xff]
    %v178 = vld [vmem:[#allocation2 + $0x280] sm:$0xff]
    %v179 = vld [vmem:[#allocation2 + $0x288] sm:$0xff]
    %v180 = vld [vmem:[#allocation2 + $0x290] sm:$0xff]
    %v181 = vld [vmem:[#allocation2 + $0x298] sm:$0xff]
    %v182 = vld [vmem:[#allocation2 + $0x2a0] sm:$0xff]
    %v183 = vld [vmem:[#allocation2 + $0x2a8] sm:$0xff]
    %v184 = vld [vmem:[#allocation2 + $0x2b0] sm:$0xff]
    %v185 = vld [vmem:[#allocation2 + $0x2b8] sm:$0xff]
    %v186 = vld [vmem:[#allocation2 + $0x2c0] sm:$0xff]
    %v187 = vld [vmem:[#allocation2 + $0x2c8] sm:$0xff]
    %v188 = vld [vmem:[#allocation2 + $0x2d0] sm:$0xff]
    %v189 = vld [vmem:[#allocation2 + $0x2d8] sm:$0xff]
    %v190 = vld [vmem:[#allocation2 + $0x2e0] sm:$0xff]
    %v191 = vld [vmem:[#allocation2 + $0x2e8] sm:$0xff]
    %v192 = vld [vmem:[#allocation2 + $0x2f0] sm:$0xff]
    %v193 = vld [vmem:[#allocation2 + $0x2f8] sm:$0xff]
    %v194 = vld [vmem:[#allocation2 + $0x300] sm:$0xff]
    %v195 = vld [vmem:[#allocation2 + $0x308] sm:$0xff]
    %v196 = vld [vmem:[#allocation2 + $0x310] sm:$0xff]
    %v197 = vld [vmem:[#allocation2 + $0x318] sm:$0xff]
    %v198 = vld [vmem:[#allocation5] sm:$0xf]
    %v200 = vperm.slane %v198, 0
    %v201 = vperm.slane %v198, 1
    %v202 = vperm.slane %v198, 2
    %v203 = vperm.slane %v198, 3
    %209 = vst [vmem:[#allocation1] ss:$4 sm:$0xff] %v97
    %v210 = vld.sshfl [vmem:[#allocation1] sm:$0xff pattern:$0x73625140]
    %v211 = vld.sshfl [vmem:[#allocation1 + $0x8] sm:$0xff pattern:$0x73625140]
    %v212 = vld.sshfl [vmem:[#allocation1 + $0x10] sm:$0xff pattern:$0x73625140]
    %v213 = vld.sshfl [vmem:[#allocation1 + $0x18] sm:$0xff pattern:$0x73625140]
    %v317 = vunpack.c.l.b16 %v98
    %v318 = vunpack.c.h.b16 %v98
    %v319 = vunpack.c.l.b16 %v99
    %v320 = vunpack.c.h.b16 %v99
    %v321 = vunpack.c.l.b16 %v100
    %v322 = vunpack.c.h.b16 %v100
    %v323 = vunpack.c.l.b16 %v101
    %v324 = vunpack.c.h.b16 %v101
    %v325 = vunpack.c.l.b16 %v102
    %v326 = vunpack.c.h.b16 %v102
    %v327 = vunpack.c.l.b16 %v103
    %v328 = vunpack.c.h.b16 %v103
    %v329 = vunpack.c.l.b16 %v104
    %v330 = vunpack.c.h.b16 %v104
    %v331 = vunpack.c.l.b16 %v105
    %v332 = vunpack.c.h.b16 %v105
    %v333 = vunpack.c.l.b16 %v106
    %v334 = vunpack.c.h.b16 %v106
    %v335 = vunpack.c.l.b16 %v107
    %v336 = vunpack.c.h.b16 %v107
    %v337 = vunpack.c.l.b16 %v108
    %v338 = vunpack.c.h.b16 %v108
    %v339 = vunpack.c.l.b16 %v109
    %v340 = vunpack.c.h.b16 %v109
    %v341 = vunpack.c.l.b16 %v110
    %v342 = vunpack.c.h.b16 %v110
    %v343 = vunpack.c.l.b16 %v111
    %v344 = vunpack.c.h.b16 %v111
    %v345 = vunpack.c.l.b16 %v112
    %v346 = vunpack.c.h.b16 %v112
    %v347 = vunpack.c.l.b16 %v113
    %v348 = vunpack.c.h.b16 %v113
    %v349 = vunpack.c.l.b16 %v114
    %v350 = vunpack.c.h.b16 %v114
    %v351 = vunpack.c.l.b16 %v115
    %v352 = vunpack.c.h.b16 %v115
    %v353 = vunpack.c.l.b16 %v116
    %v354 = vunpack.c.h.b16 %v116
    %v355 = vunpack.c.l.b16 %v117
    %v356 = vunpack.c.h.b16 %v117
    %v357 = vunpack.c.l.b16 %v118
    %v358 = vunpack.c.h.b16 %v118
    %v359 = vunpack.c.l.b16 %v119
    %v360 = vunpack.c.h.b16 %v119
    %v361 = vunpack.c.l.b16 %v120
    %v362 = vunpack.c.h.b16 %v120
    %v363 = vunpack.c.l.b16 %v121
    %v364 = vunpack.c.h.b16 %v121
    %v365 = vunpack.c.l.b16 %v122
    %v366 = vunpack.c.h.b16 %v122
    %v367 = vunpack.c.l.b16 %v123
    %v368 = vunpack.c.h.b16 %v123
    %v369 = vunpack.c.l.b16 %v124
    %v370 = vunpack.c.h.b16 %v124
    %v371 = vunpack.c.l.b16 %v125
    %v372 = vunpack.c.h.b16 %v125
    %v373 = vunpack.c.l.b16 %v126
    %v374 = vunpack.c.h.b16 %v126
    %v375 = vunpack.c.l.b16 %v127
    %v376 = vunpack.c.h.b16 %v127
    %v377 = vunpack.c.l.b16 %v128
    %v378 = vunpack.c.h.b16 %v128
    %v379 = vunpack.c.l.b16 %v129
    %v380 = vunpack.c.h.b16 %v129
    %v381 = vunpack.c.l.b16 %v130
    %v382 = vunpack.c.h.b16 %v130
    %v383 = vunpack.c.l.b16 %v131
    %v384 = vunpack.c.h.b16 %v131
    %v385 = vunpack.c.l.b16 %v132
    %v386 = vunpack.c.h.b16 %v132
    %v387 = vunpack.c.l.b16 %v133
    %v388 = vunpack.c.h.b16 %v133
    %v389 = vunpack.c.l.b16 %v134
    %v390 = vunpack.c.h.b16 %v134
    %v391 = vunpack.c.l.b16 %v135
    %v392 = vunpack.c.h.b16 %v135
    %v393 = vunpack.c.l.b16 %v136
    %v394 = vunpack.c.h.b16 %v136
    %v395 = vunpack.c.l.b16 %v137
    %v396 = vunpack.c.h.b16 %v137
    %v397 = vunpack.c.l.b16 %v138
    %v398 = vunpack.c.h.b16 %v138
    %v399 = vunpack.c.l.b16 %v139
    %v400 = vunpack.c.h.b16 %v139
    %v401 = vunpack.c.l.b16 %v140
    %v402 = vunpack.c.h.b16 %v140
    %v403 = vunpack.c.l.b16 %v141
    %v404 = vunpack.c.h.b16 %v141
    %v405 = vunpack.c.l.b16 %v142
    %v406 = vunpack.c.h.b16 %v142
    %v407 = vunpack.c.l.b16 %v143
    %v408 = vunpack.c.h.b16 %v143
    %v409 = vunpack.c.l.b16 %v144
    %v410 = vunpack.c.h.b16 %v144
    %v411 = vunpack.c.l.b16 %v145
    %v412 = vunpack.c.h.b16 %v145
    %v413 = vunpack.c.l.b16 %v146
    %v414 = vunpack.c.h.b16 %v146
    %v415 = vunpack.c.l.b16 %v147
    %v416 = vunpack.c.h.b16 %v147
    %v417 = vunpack.c.l.b16 %v148
    %v418 = vunpack.c.h.b16 %v148
    %v419 = vunpack.c.l.b16 %v149
    %v420 = vunpack.c.h.b16 %v149
    %v421 = vunpack.c.l.b16 %v150
    %v422 = vunpack.c.h.b16 %v150
    %v423 = vunpack.c.l.b16 %v151
    %v424 = vunpack.c.h.b16 %v151
    %v425 = vunpack.c.l.b16 %v152
    %v426 = vunpack.c.h.b16 %v152
    %v427 = vunpack.c.l.b16 %v153
    %v428 = vunpack.c.h.b16 %v153
    %v429 = vunpack.c.l.b16 %v154
    %v430 = vunpack.c.h.b16 %v154
    %v431 = vunpack.c.l.b16 %v155
    %v432 = vunpack.c.h.b16 %v155
    %v433 = vunpack.c.l.b16 %v156
    %v434 = vunpack.c.h.b16 %v156
    %v435 = vunpack.c.l.b16 %v157
    %v436 = vunpack.c.h.b16 %v157
    %v437 = vunpack.c.l.b16 %v158
    %v438 = vunpack.c.h.b16 %v158
    %v439 = vunpack.c.l.b16 %v159
    %v440 = vunpack.c.h.b16 %v159
    %v441 = vunpack.c.l.b16 %v160
    %v442 = vunpack.c.h.b16 %v160
    %v443 = vunpack.c.l.b16 %v161
    %v444 = vunpack.c.h.b16 %v161
    %v445 = vunpack.c.l.b16 %v162
    %v446 = vunpack.c.h.b16 %v162
    %v447 = vunpack.c.l.b16 %v163
    %v448 = vunpack.c.h.b16 %v163
    %v449 = vunpack.c.l.b16 %v164
    %v450 = vunpack.c.h.b16 %v164
    %v451 = vunpack.c.l.b16 %v165
    %v452 = vunpack.c.h.b16 %v165
    %v453 = vunpack.c.l.b16 %v166
    %v454 = vunpack.c.h.b16 %v166
    %v455 = vunpack.c.l.b16 %v167
    %v456 = vunpack.c.h.b16 %v167
    %v457 = vunpack.c.l.b16 %v168
    %v458 = vunpack.c.h.b16 %v168
    %v459 = vunpack.c.l.b16 %v169
    %v460 = vunpack.c.h.b16 %v169
    %v461 = vunpack.c.l.b16 %v170
    %v462 = vunpack.c.h.b16 %v170
    %v463 = vunpack.c.l.b16 %v171
    %v464 = vunpack.c.h.b16 %v171
    %v465 = vunpack.c.l.b16 %v172
    %v466 = vunpack.c.h.b16 %v172
    %v467 = vunpack.c.l.b16 %v173
    %v468 = vunpack.c.h.b16 %v173
    %v469 = vunpack.c.l.b16 %v174
    %v470 = vunpack.c.h.b16 %v174
    %v471 = vunpack.c.l.b16 %v175
    %v472 = vunpack.c.h.b16 %v175
    %v473 = vunpack.c.l.b16 %v176
    %v474 = vunpack.c.h.b16 %v176
    %v475 = vunpack.c.l.b16 %v177
    %v476 = vunpack.c.h.b16 %v177
    %v477 = vunpack.c.l.b16 %v178
    %v478 = vunpack.c.h.b16 %v178
    %v479 = vunpack.c.l.b16 %v179
    %v480 = vunpack.c.h.b16 %v179
    %v481 = vunpack.c.l.b16 %v180
    %v482 = vunpack.c.h.b16 %v180
    %v483 = vunpack.c.l.b16 %v181
    %v484 = vunpack.c.h.b16 %v181
    %v485 = vunpack.c.l.b16 %v182
    %v486 = vunpack.c.h.b16 %v182
    %v487 = vunpack.c.l.b16 %v183
    %v488 = vunpack.c.h.b16 %v183
    %v489 = vunpack.c.l.b16 %v184
    %v490 = vunpack.c.h.b16 %v184
    %v491 = vunpack.c.l.b16 %v185
    %v492 = vunpack.c.h.b16 %v185
    %v493 = vunpack.c.l.b16 %v186
    %v494 = vunpack.c.h.b16 %v186
    %v495 = vunpack.c.l.b16 %v187
    %v496 = vunpack.c.h.b16 %v187
    %v497 = vunpack.c.l.b16 %v188
    %v498 = vunpack.c.h.b16 %v188
    %v499 = vunpack.c.l.b16 %v189
    %v500 = vunpack.c.h.b16 %v189
    %v501 = vunpack.c.l.b16 %v190
    %v502 = vunpack.c.h.b16 %v190
    %v503 = vunpack.c.l.b16 %v191
    %v504 = vunpack.c.h.b16 %v191
    %v505 = vunpack.c.l.b16 %v192
    %v506 = vunpack.c.h.b16 %v192
    %v507 = vunpack.c.l.b16 %v193
    %v508 = vunpack.c.h.b16 %v193
    %v509 = vunpack.c.l.b16 %v194
    %v510 = vunpack.c.h.b16 %v194
    %v511 = vunpack.c.l.b16 %v195
    %v512 = vunpack.c.h.b16 %v195
    %v513 = vunpack.c.l.b16 %v196
    %v514 = vunpack.c.h.b16 %v196
    %v515 = vunpack.c.l.b16 %v197
    %v516 = vunpack.c.h.b16 %v197
    %v517 = vpack.c.b16 %v321, %v317
    %v518 = vpack.c.b16 %v322, %v318
    %v519 = vpack.c.b16 %v323, %v319
    %v520 = vpack.c.b16 %v324, %v320
    %v521 = vpack.c.b16 %v329, %v325
    %v522 = vpack.c.b16 %v330, %v326
    %v523 = vpack.c.b16 %v331, %v327
    %v524 = vpack.c.b16 %v332, %v328
    %v525 = vpack.c.b16 %v337, %v333
    %v526 = vpack.c.b16 %v338, %v334
    %v527 = vpack.c.b16 %v339, %v335
    %v528 = vpack.c.b16 %v340, %v336
    %v529 = vpack.c.b16 %v345, %v341
    %v530 = vpack.c.b16 %v346, %v342
    %v531 = vpack.c.b16 %v347, %v343
    %v532 = vpack.c.b16 %v348, %v344
    %v533 = vpack.c.b16 %v353, %v349
    %v534 = vpack.c.b16 %v354, %v350
    %v535 = vpack.c.b16 %v355, %v351
    %v536 = vpack.c.b16 %v356, %v352
    %v537 = vpack.c.b16 %v361, %v357
    %v538 = vpack.c.b16 %v362, %v358
    %v539 = vpack.c.b16 %v363, %v359
    %v540 = vpack.c.b16 %v364, %v360
    %v541 = vpack.c.b16 %v369, %v365
    %v542 = vpack.c.b16 %v370, %v366
    %v543 = vpack.c.b16 %v371, %v367
    %v544 = vpack.c.b16 %v372, %v368
    %v545 = vpack.c.b16 %v377, %v373
    %v546 = vpack.c.b16 %v378, %v374
    %v547 = vpack.c.b16 %v379, %v375
    %v548 = vpack.c.b16 %v380, %v376
    %v549 = vpack.c.b16 %v385, %v381
    %v550 = vpack.c.b16 %v386, %v382
    %v551 = vpack.c.b16 %v387, %v383
    %v552 = vpack.c.b16 %v388, %v384
    %v553 = vpack.c.b16 %v393, %v389
    %v554 = vpack.c.b16 %v394, %v390
    %v555 = vpack.c.b16 %v395, %v391
    %v556 = vpack.c.b16 %v396, %v392
    %v557 = vpack.c.b16 %v401, %v397
    %v558 = vpack.c.b16 %v402, %v398
    %v559 = vpack.c.b16 %v403, %v399
    %v560 = vpack.c.b16 %v404, %v400
    %v561 = vpack.c.b16 %v409, %v405
    %v562 = vpack.c.b16 %v410, %v406
    %v563 = vpack.c.b16 %v411, %v407
    %v564 = vpack.c.b16 %v412, %v408
    %v565 = vpack.c.b16 %v417, %v413
    %v566 = vpack.c.b16 %v418, %v414
    %v567 = vpack.c.b16 %v419, %v415
    %v568 = vpack.c.b16 %v420, %v416
    %v569 = vpack.c.b16 %v425, %v421
    %v570 = vpack.c.b16 %v426, %v422
    %v571 = vpack.c.b16 %v427, %v423
    %v572 = vpack.c.b16 %v428, %v424
    %v573 = vpack.c.b16 %v433, %v429
    %v574 = vpack.c.b16 %v434, %v430
    %v575 = vpack.c.b16 %v435, %v431
    %v576 = vpack.c.b16 %v436, %v432
    %v577 = vpack.c.b16 %v441, %v437
    %v578 = vpack.c.b16 %v442, %v438
    %v579 = vpack.c.b16 %v443, %v439
    %v580 = vpack.c.b16 %v444, %v440
    %v581 = vpack.c.b16 %v449, %v445
    %v582 = vpack.c.b16 %v450, %v446
    %v583 = vpack.c.b16 %v451, %v447
    %v584 = vpack.c.b16 %v452, %v448
    %v585 = vpack.c.b16 %v457, %v453
    %v586 = vpack.c.b16 %v458, %v454
    %v587 = vpack.c.b16 %v459, %v455
    %v588 = vpack.c.b16 %v460, %v456
    %v589 = vpack.c.b16 %v465, %v461
    %v590 = vpack.c.b16 %v466, %v462
    %v591 = vpack.c.b16 %v467, %v463
    %v592 = vpack.c.b16 %v468, %v464
    %v593 = vpack.c.b16 %v473, %v469
    %v594 = vpack.c.b16 %v474, %v470
    %v595 = vpack.c.b16 %v475, %v471
    %v596 = vpack.c.b16 %v476, %v472
    %v597 = vpack.c.b16 %v481, %v477
    %v598 = vpack.c.b16 %v482, %v478
    %v599 = vpack.c.b16 %v483, %v479
    %v600 = vpack.c.b16 %v484, %v480
    %v601 = vpack.c.b16 %v489, %v485
    %v602 = vpack.c.b16 %v490, %v486
    %v603 = vpack.c.b16 %v491, %v487
    %v604 = vpack.c.b16 %v492, %v488
    %v605 = vpack.c.b16 %v497, %v493
    %v606 = vpack.c.b16 %v498, %v494
    %v607 = vpack.c.b16 %v499, %v495
    %v608 = vpack.c.b16 %v500, %v496
    %v609 = vpack.c.b16 %v505, %v501
    %v610 = vpack.c.b16 %v506, %v502
    %v611 = vpack.c.b16 %v507, %v503
    %v612 = vpack.c.b16 %v508, %v504
    %v613 = vpack.c.b16 %v513, %v509
    %v614 = vpack.c.b16 %v514, %v510
    %v615 = vpack.c.b16 %v515, %v511
    %v616 = vpack.c.b16 %v516, %v512
    %vm717 = vcmask 130048
    %v718 = vsel %vm717, %v213, 0
    %720 = vmatpush.bf16.msra.mxu0 %v545
    %721 = vmatpush.bf16.msra.mxu0 %v541
    %722 = vmatpush.bf16.msra.mxu0 %v537
    %723 = vmatpush.bf16.msra.mxu0 %v533
    %724 = vmatpush.bf16.msra.mxu0 %v529
    %725 = vmatpush.bf16.msra.mxu0 %v525
    %726 = vmatpush.bf16.msra.mxu0 %v521
    %727 = vmatpush.bf16.msra.mxu0 %v517
    %728 = vmatmul.bf16.gmra.mxu0 %v210
    %v729 = vpop.f32.mrf.mxu0
    %v730 = vadd.f32 %v200, %v729
    %v731 = vpop.f32.mrf.mxu0
    %732 = vdwg.mxu0
    %733 = vmatpush.bf16.msra.mxu0 %v577
    %734 = vmatpush.bf16.msra.mxu0 %v573
    %735 = vmatpush.bf16.msra.mxu0 %v569
    %736 = vmatpush.bf16.msra.mxu0 %v565
    %737 = vmatpush.bf16.msra.mxu0 %v561
    %738 = vmatpush.bf16.msra.mxu0 %v557
    %739 = vmatpush.bf16.msra.mxu0 %v553
    %740 = vmatpush.bf16.msra.mxu0 %v549
    %741 = vmatmul.bf16.gmra.mxu0 %v211
    %v742 = vpop.f32.mrf.mxu0
    %v743 = vadd.f32 %v730, %v742
    %v744 = vpop.f32.mrf.mxu0
    %745 = vdwg.mxu0
    %746 = vmatpush.bf16.msra.mxu0 %v609
    %747 = vmatpush.bf16.msra.mxu0 %v605
    %748 = vmatpush.bf16.msra.mxu0 %v601
    %749 = vmatpush.bf16.msra.mxu0 %v597
    %750 = vmatpush.bf16.msra.mxu0 %v593
    %751 = vmatpush.bf16.msra.mxu0 %v589
    %752 = vmatpush.bf16.msra.mxu0 %v585
    %753 = vmatpush.bf16.msra.mxu0 %v581
    %754 = vmatmul.bf16.gmra.mxu0 %v212
    %v755 = vpop.f32.mrf.mxu0
    %v756 = vadd.f32 %v743, %v755
    %v757 = vpop.f32.mrf.mxu0
    %758 = vdwg.mxu0
    %759 = vmatpush.bf16.msra.mxu0 0
    %760 = vmatpush.bf16.msra.mxu0 0
    %761 = vmatpush.bf16.msra.mxu0 0
    %762 = vmatpush.bf16.msra.mxu0 0
    %763 = vmatpush.bf16.msra.mxu0 0
    %764 = vmatpush.bf16.msra.mxu0 0
    %765 = vmatpush.bf16.msra.mxu0 0
    %766 = vmatpush.bf16.msra.mxu0 %v613
    %767 = vmatmul.bf16.gmra.mxu0 %v718
    %v768 = vpop.f32.mrf.mxu0
    %v769 = vadd.f32 %v756, %v768
    %v770 = vpop.f32.mrf.mxu0
    %771 = vdwg.mxu0
    %772 = vmatpush.bf16.msra.mxu0 %v546
    %773 = vmatpush.bf16.msra.mxu0 %v542
    %774 = vmatpush.bf16.msra.mxu0 %v538
    %775 = vmatpush.bf16.msra.mxu0 %v534
    %776 = vmatpush.bf16.msra.mxu0 %v530
    %777 = vmatpush.bf16.msra.mxu0 %v526
    %778 = vmatpush.bf16.msra.mxu0 %v522
    %779 = vmatpush.bf16.msra.mxu0 %v518
    %780 = vmatmul.bf16.gmra.mxu0 %v210
    %v781 = vpop.f32.mrf.mxu0
    %v782 = vadd.f32 %v201, %v781
    %v783 = vpop.f32.mrf.mxu0
    %784 = vdwg.mxu0
    %785 = vmatpush.bf16.msra.mxu0 %v578
    %786 = vmatpush.bf16.msra.mxu0 %v574
    %787 = vmatpush.bf16.msra.mxu0 %v570
    %788 = vmatpush.bf16.msra.mxu0 %v566
    %789 = vmatpush.bf16.msra.mxu0 %v562
    %790 = vmatpush.bf16.msra.mxu0 %v558
    %791 = vmatpush.bf16.msra.mxu0 %v554
    %792 = vmatpush.bf16.msra.mxu0 %v550
    %793 = vmatmul.bf16.gmra.mxu0 %v211
    %v794 = vpop.f32.mrf.mxu0
    %v795 = vadd.f32 %v782, %v794
    %v796 = vpop.f32.mrf.mxu0
    %797 = vdwg.mxu0
    %798 = vmatpush.bf16.msra.mxu0 %v610
    %799 = vmatpush.bf16.msra.mxu0 %v606
    %800 = vmatpush.bf16.msra.mxu0 %v602
    %801 = vmatpush.bf16.msra.mxu0 %v598
    %802 = vmatpush.bf16.msra.mxu0 %v594
    %803 = vmatpush.bf16.msra.mxu0 %v590
    %804 = vmatpush.bf16.msra.mxu0 %v586
    %805 = vmatpush.bf16.msra.mxu0 %v582
    %806 = vmatmul.bf16.gmra.mxu0 %v212
    %v807 = vpop.f32.mrf.mxu0
    %v808 = vadd.f32 %v795, %v807
    %v809 = vpop.f32.mrf.mxu0
    %810 = vdwg.mxu0
    %811 = vmatpush.bf16.msra.mxu0 0
    %812 = vmatpush.bf16.msra.mxu0 0
    %813 = vmatpush.bf16.msra.mxu0 0
    %814 = vmatpush.bf16.msra.mxu0 0
    %815 = vmatpush.bf16.msra.mxu0 0
    %816 = vmatpush.bf16.msra.mxu0 0
    %817 = vmatpush.bf16.msra.mxu0 0
    %818 = vmatpush.bf16.msra.mxu0 %v614
    %819 = vmatmul.bf16.gmra.mxu0 %v718
    %v820 = vpop.f32.mrf.mxu0
    %v821 = vadd.f32 %v808, %v820
    %v822 = vpop.f32.mrf.mxu0
    %823 = vdwg.mxu0
    %824 = vmatpush.bf16.msra.mxu0 %v547
    %825 = vmatpush.bf16.msra.mxu0 %v543
    %826 = vmatpush.bf16.msra.mxu0 %v539
    %827 = vmatpush.bf16.msra.mxu0 %v535
    %828 = vmatpush.bf16.msra.mxu0 %v531
    %829 = vmatpush.bf16.msra.mxu0 %v527
    %830 = vmatpush.bf16.msra.mxu0 %v523
    %831 = vmatpush.bf16.msra.mxu0 %v519
    %832 = vmatmul.bf16.gmra.mxu0 %v210
    %v833 = vpop.f32.mrf.mxu0
    %v834 = vadd.f32 %v202, %v833
    %v835 = vpop.f32.mrf.mxu0
    %836 = vdwg.mxu0
    %837 = vmatpush.bf16.msra.mxu0 %v579
    %838 = vmatpush.bf16.msra.mxu0 %v575
    %839 = vmatpush.bf16.msra.mxu0 %v571
    %840 = vmatpush.bf16.msra.mxu0 %v567
    %841 = vmatpush.bf16.msra.mxu0 %v563
    %842 = vmatpush.bf16.msra.mxu0 %v559
    %843 = vmatpush.bf16.msra.mxu0 %v555
    %844 = vmatpush.bf16.msra.mxu0 %v551
    %845 = vmatmul.bf16.gmra.mxu0 %v211
    %v846 = vpop.f32.mrf.mxu0
    %v847 = vadd.f32 %v834, %v846
    %v848 = vpop.f32.mrf.mxu0
    %849 = vdwg.mxu0
    %850 = vmatpush.bf16.msra.mxu0 %v611
    %851 = vmatpush.bf16.msra.mxu0 %v607
    %852 = vmatpush.bf16.msra.mxu0 %v603
    %853 = vmatpush.bf16.msra.mxu0 %v599
    %854 = vmatpush.bf16.msra.mxu0 %v595
    %855 = vmatpush.bf16.msra.mxu0 %v591
    %856 = vmatpush.bf16.msra.mxu0 %v587
    %857 = vmatpush.bf16.msra.mxu0 %v583
    %858 = vmatmul.bf16.gmra.mxu0 %v212
    %v859 = vpop.f32.mrf.mxu0
    %v860 = vadd.f32 %v847, %v859
    %v861 = vpop.f32.mrf.mxu0
    %862 = vdwg.mxu0
    %863 = vmatpush.bf16.msra.mxu0 0
    %864 = vmatpush.bf16.msra.mxu0 0
    %865 = vmatpush.bf16.msra.mxu0 0
    %866 = vmatpush.bf16.msra.mxu0 0
    %867 = vmatpush.bf16.msra.mxu0 0
    %868 = vmatpush.bf16.msra.mxu0 0
    %869 = vmatpush.bf16.msra.mxu0 0
    %870 = vmatpush.bf16.msra.mxu0 %v615
    %871 = vmatmul.bf16.gmra.mxu0 %v718
    %v872 = vpop.f32.mrf.mxu0
    %v873 = vadd.f32 %v860, %v872
    %v874 = vpop.f32.mrf.mxu0
    %875 = vdwg.mxu0
    %876 = vmatpush.bf16.msra.mxu0 %v548
    %877 = vmatpush.bf16.msra.mxu0 %v544
    %878 = vmatpush.bf16.msra.mxu0 %v540
    %879 = vmatpush.bf16.msra.mxu0 %v536
    %880 = vmatpush.bf16.msra.mxu0 %v532
    %881 = vmatpush.bf16.msra.mxu0 %v528
    %882 = vmatpush.bf16.msra.mxu0 %v524
    %883 = vmatpush.bf16.msra.mxu0 %v520
    %884 = vmatmul.bf16.gmra.mxu0 %v210
    %v885 = vpop.f32.mrf.mxu0
    %v886 = vadd.f32 %v203, %v885
    %v887 = vpop.f32.mrf.mxu0
    %888 = vdwg.mxu0
    %889 = vmatpush.bf16.msra.mxu0 %v580
    %890 = vmatpush.bf16.msra.mxu0 %v576
    %891 = vmatpush.bf16.msra.mxu0 %v572
    %892 = vmatpush.bf16.msra.mxu0 %v568
    %893 = vmatpush.bf16.msra.mxu0 %v564
    %894 = vmatpush.bf16.msra.mxu0 %v560
    %895 = vmatpush.bf16.msra.mxu0 %v556
    %896 = vmatpush.bf16.msra.mxu0 %v552
    %897 = vmatmul.bf16.gmra.mxu0 %v211
    %v898 = vpop.f32.mrf.mxu0
    %v899 = vadd.f32 %v886, %v898
    %v900 = vpop.f32.mrf.mxu0
    %901 = vdwg.mxu0
    %902 = vmatpush.bf16.msra.mxu0 %v612
    %903 = vmatpush.bf16.msra.mxu0 %v608
    %904 = vmatpush.bf16.msra.mxu0 %v604
    %905 = vmatpush.bf16.msra.mxu0 %v600
    %906 = vmatpush.bf16.msra.mxu0 %v596
    %907 = vmatpush.bf16.msra.mxu0 %v592
    %908 = vmatpush.bf16.msra.mxu0 %v588
    %909 = vmatpush.bf16.msra.mxu0 %v584
    %910 = vmatmul.bf16.gmra.mxu0 %v212
    %v911 = vpop.f32.mrf.mxu0
    %v912 = vadd.f32 %v899, %v911
    %v913 = vpop.f32.mrf.mxu0
    %914 = vdwg.mxu0
    %915 = vmatpush.bf16.msra.mxu0 0
    %916 = vmatpush.bf16.msra.mxu0 0
    %917 = vmatpush.bf16.msra.mxu0 0
    %918 = vmatpush.bf16.msra.mxu0 0
    %919 = vmatpush.bf16.msra.mxu0 0
    %920 = vmatpush.bf16.msra.mxu0 0
    %921 = vmatpush.bf16.msra.mxu0 0
    %922 = vmatpush.bf16.msra.mxu0 %v616
    %923 = vmatmul.bf16.gmra.mxu0 %v718
    %v924 = vpop.f32.mrf.mxu0
    %v925 = vadd.f32 %v912, %v924
    %v926 = vpop.f32.mrf.mxu0
    %927 = vdwg.mxu0
    %v928 = vmax.f32 %v769, 0.0
    %v929 = vmax.f32 %v821, 0.0
    %v930 = vmax.f32 %v873, 0.0
    %v931 = vmax.f32 %v925, 0.0
    %v932 = vpack.c.bf16 %v928, %v928
    %v933 = vpack.c.bf16 %v929, %v929
    %v934 = vpack.c.bf16 %v930, %v930
    %v935 = vpack.c.bf16 %v931, %v931
    %v936 = vld [vmem:[%s3] sm:$0xff]
    %v937 = vld [vmem:[%s3 + $0x8] sm:$0xff]
    %v938 = vld [vmem:[%s3 + $0x10] sm:$0xff]
    %v939 = vld [vmem:[%s3 + $0x18] sm:$0xff]
    %v940 = vld [vmem:[%s3 + $0x20] sm:$0xff]
    %v941 = vld [vmem:[%s3 + $0x28] sm:$0xff]
    %v942 = vld [vmem:[%s3 + $0x30] sm:$0xff]
    %v943 = vld [vmem:[%s3 + $0x38] sm:$0xff]
    %v944 = vld [vmem:[%s3 + $0x40] sm:$0xff]
    %v945 = vld [vmem:[%s3 + $0x48] sm:$0xff]
    %v946 = vld [vmem:[%s3 + $0x50] sm:$0xff]
    %v947 = vld [vmem:[%s3 + $0x58] sm:$0xff]
    %v948 = vld [vmem:[%s3 + $0x60] sm:$0xff]
    %v949 = vld [vmem:[%s3 + $0x68] sm:$0xff]
    %v950 = vld [vmem:[%s3 + $0x70] sm:$0xff]
    %v951 = vld [vmem:[%s3 + $0x78] sm:$0xff]
    %v952 = vld [vmem:[%s3 + $0x80] sm:$0xff]
    %v953 = vld [vmem:[%s3 + $0x88] sm:$0xff]
    %v954 = vld [vmem:[%s3 + $0x90] sm:$0xff]
    %v955 = vld [vmem:[%s3 + $0x98] sm:$0xff]
    %v956 = vld [vmem:[%s3 + $0xa0] sm:$0xff]
    %v957 = vld [vmem:[%s3 + $0xa8] sm:$0xff]
    %v958 = vld [vmem:[%s3 + $0xb0] sm:$0xff]
    %v959 = vld [vmem:[%s3 + $0xb8] sm:$0xff]
    %v960 = vld [vmem:[%s3 + $0xc0] sm:$0xff]
    %v961 = vld [vmem:[%s3 + $0xc8] sm:$0xff]
    %v962 = vld [vmem:[%s3 + $0xd0] sm:$0xff]
    %v963 = vld [vmem:[%s3 + $0xd8] sm:$0xff]
    %v964 = vld [vmem:[%s3 + $0xe0] sm:$0xff]
    %v965 = vld [vmem:[%s3 + $0xe8] sm:$0xff]
    %v966 = vld [vmem:[%s3 + $0xf0] sm:$0xff]
    %v967 = vld [vmem:[%s3 + $0xf8] sm:$0xff]
    %v968 = vld [vmem:[%s3 + $0x100] sm:$0xff]
    %v969 = vld [vmem:[%s3 + $0x108] sm:$0xff]
    %v970 = vld [vmem:[%s3 + $0x110] sm:$0xff]
    %v971 = vld [vmem:[%s3 + $0x118] sm:$0xff]
    %v972 = vld [vmem:[%s3 + $0x120] sm:$0xff]
    %v973 = vld [vmem:[%s3 + $0x128] sm:$0xff]
    %v974 = vld [vmem:[%s3 + $0x130] sm:$0xff]
    %v975 = vld [vmem:[%s3 + $0x138] sm:$0xff]
    %v976 = vld [vmem:[%s3 + $0x140] sm:$0xff]
    %v977 = vld [vmem:[%s3 + $0x148] sm:$0xff]
    %v978 = vld [vmem:[%s3 + $0x150] sm:$0xff]
    %v979 = vld [vmem:[%s3 + $0x158] sm:$0xff]
    %v980 = vld [vmem:[%s3 + $0x160] sm:$0xff]
    %v981 = vld [vmem:[%s3 + $0x168] sm:$0xff]
    %v982 = vld [vmem:[%s3 + $0x170] sm:$0xff]
    %v983 = vld [vmem:[%s3 + $0x178] sm:$0xff]
    %v984 = vld [vmem:[%s3 + $0x180] sm:$0xff]
    %v985 = vld [vmem:[%s3 + $0x188] sm:$0xff]
    %v986 = vld [vmem:[%s3 + $0x190] sm:$0xff]
    %v987 = vld [vmem:[%s3 + $0x198] sm:$0xff]
    %v988 = vld [vmem:[%s3 + $0x1a0] sm:$0xff]
    %v989 = vld [vmem:[%s3 + $0x1a8] sm:$0xff]
    %v990 = vld [vmem:[%s3 + $0x1b0] sm:$0xff]
    %v991 = vld [vmem:[%s3 + $0x1b8] sm:$0xff]
    %v992 = vld [vmem:[%s3 + $0x1c0] sm:$0xff]
    %v993 = vld [vmem:[%s3 + $0x1c8] sm:$0xff]
    %v994 = vld [vmem:[%s3 + $0x1d0] sm:$0xff]
    %v995 = vld [vmem:[%s3 + $0x1d8] sm:$0xff]
    %v996 = vld [vmem:[%s3 + $0x1e0] sm:$0xff]
    %v997 = vld [vmem:[%s3 + $0x1e8] sm:$0xff]
    %v998 = vld [vmem:[%s3 + $0x1f0] sm:$0xff]
    %v999 = vld [vmem:[%s3 + $0x1f8] sm:$0xff]
    %v1000 = vld [vmem:[%s4] ss:$4 sm:$0x3]
    %v1002 = vperm.slane %v1000, 0
    %v1003 = vperm.slane %v1000, 1
    %v1070 = vunpack.c.l.b16 %v936
    %v1071 = vunpack.c.h.b16 %v936
    %v1072 = vunpack.c.l.b16 %v937
    %v1073 = vunpack.c.h.b16 %v937
    %v1074 = vunpack.c.l.b16 %v938
    %v1075 = vunpack.c.h.b16 %v938
    %v1076 = vunpack.c.l.b16 %v939
    %v1077 = vunpack.c.h.b16 %v939
    %v1078 = vunpack.c.l.b16 %v940
    %v1079 = vunpack.c.h.b16 %v940
    %v1080 = vunpack.c.l.b16 %v941
    %v1081 = vunpack.c.h.b16 %v941
    %v1082 = vunpack.c.l.b16 %v942
    %v1083 = vunpack.c.h.b16 %v942
    %v1084 = vunpack.c.l.b16 %v943
    %v1085 = vunpack.c.h.b16 %v943
    %v1086 = vunpack.c.l.b16 %v944
    %v1087 = vunpack.c.h.b16 %v944
    %v1088 = vunpack.c.l.b16 %v945
    %v1089 = vunpack.c.h.b16 %v945
    %v1090 = vunpack.c.l.b16 %v946
    %v1091 = vunpack.c.h.b16 %v946
    %v1092 = vunpack.c.l.b16 %v947
    %v1093 = vunpack.c.h.b16 %v947
    %v1094 = vunpack.c.l.b16 %v948
    %v1095 = vunpack.c.h.b16 %v948
    %v1096 = vunpack.c.l.b16 %v949
    %v1097 = vunpack.c.h.b16 %v949
    %v1098 = vunpack.c.l.b16 %v950
    %v1099 = vunpack.c.h.b16 %v950
    %v1100 = vunpack.c.l.b16 %v951
    %v1101 = vunpack.c.h.b16 %v951
    %v1102 = vunpack.c.l.b16 %v952
    %v1103 = vunpack.c.h.b16 %v952
    %v1104 = vunpack.c.l.b16 %v953
    %v1105 = vunpack.c.h.b16 %v953
    %v1106 = vunpack.c.l.b16 %v954
    %v1107 = vunpack.c.h.b16 %v954
    %v1108 = vunpack.c.l.b16 %v955
    %v1109 = vunpack.c.h.b16 %v955
    %v1110 = vunpack.c.l.b16 %v956
    %v1111 = vunpack.c.h.b16 %v956
    %v1112 = vunpack.c.l.b16 %v957
    %v1113 = vunpack.c.h.b16 %v957
    %v1114 = vunpack.c.l.b16 %v958
    %v1115 = vunpack.c.h.b16 %v958
    %v1116 = vunpack.c.l.b16 %v959
    %v1117 = vunpack.c.h.b16 %v959
    %v1118 = vunpack.c.l.b16 %v960
    %v1119 = vunpack.c.h.b16 %v960
    %v1120 = vunpack.c.l.b16 %v961
    %v1121 = vunpack.c.h.b16 %v961
    %v1122 = vunpack.c.l.b16 %v962
    %v1123 = vunpack.c.h.b16 %v962
    %v1124 = vunpack.c.l.b16 %v963
    %v1125 = vunpack.c.h.b16 %v963
    %v1126 = vunpack.c.l.b16 %v964
    %v1127 = vunpack.c.h.b16 %v964
    %v1128 = vunpack.c.l.b16 %v965
    %v1129 = vunpack.c.h.b16 %v965
    %v1130 = vunpack.c.l.b16 %v966
    %v1131 = vunpack.c.h.b16 %v966
    %v1132 = vunpack.c.l.b16 %v967
    %v1133 = vunpack.c.h.b16 %v967
    %v1134 = vunpack.c.l.b16 %v968
    %v1135 = vunpack.c.h.b16 %v968
    %v1136 = vunpack.c.l.b16 %v969
    %v1137 = vunpack.c.h.b16 %v969
    %v1138 = vunpack.c.l.b16 %v970
    %v1139 = vunpack.c.h.b16 %v970
    %v1140 = vunpack.c.l.b16 %v971
    %v1141 = vunpack.c.h.b16 %v971
    %v1142 = vunpack.c.l.b16 %v972
    %v1143 = vunpack.c.h.b16 %v972
    %v1144 = vunpack.c.l.b16 %v973
    %v1145 = vunpack.c.h.b16 %v973
    %v1146 = vunpack.c.l.b16 %v974
    %v1147 = vunpack.c.h.b16 %v974
    %v1148 = vunpack.c.l.b16 %v975
    %v1149 = vunpack.c.h.b16 %v975
    %v1150 = vunpack.c.l.b16 %v976
    %v1151 = vunpack.c.h.b16 %v976
    %v1152 = vunpack.c.l.b16 %v977
    %v1153 = vunpack.c.h.b16 %v977
    %v1154 = vunpack.c.l.b16 %v978
    %v1155 = vunpack.c.h.b16 %v978
    %v1156 = vunpack.c.l.b16 %v979
    %v1157 = vunpack.c.h.b16 %v979
    %v1158 = vunpack.c.l.b16 %v980
    %v1159 = vunpack.c.h.b16 %v980
    %v1160 = vunpack.c.l.b16 %v981
    %v1161 = vunpack.c.h.b16 %v981
    %v1162 = vunpack.c.l.b16 %v982
    %v1163 = vunpack.c.h.b16 %v982
    %v1164 = vunpack.c.l.b16 %v983
    %v1165 = vunpack.c.h.b16 %v983
    %v1166 = vunpack.c.l.b16 %v984
    %v1167 = vunpack.c.h.b16 %v984
    %v1168 = vunpack.c.l.b16 %v985
    %v1169 = vunpack.c.h.b16 %v985
    %v1170 = vunpack.c.l.b16 %v986
    %v1171 = vunpack.c.h.b16 %v986
    %v1172 = vunpack.c.l.b16 %v987
    %v1173 = vunpack.c.h.b16 %v987
    %v1174 = vunpack.c.l.b16 %v988
    %v1175 = vunpack.c.h.b16 %v988
    %v1176 = vunpack.c.l.b16 %v989
    %v1177 = vunpack.c.h.b16 %v989
    %v1178 = vunpack.c.l.b16 %v990
    %v1179 = vunpack.c.h.b16 %v990
    %v1180 = vunpack.c.l.b16 %v991
    %v1181 = vunpack.c.h.b16 %v991
    %v1182 = vunpack.c.l.b16 %v992
    %v1183 = vunpack.c.h.b16 %v992
    %v1184 = vunpack.c.l.b16 %v993
    %v1185 = vunpack.c.h.b16 %v993
    %v1186 = vunpack.c.l.b16 %v994
    %v1187 = vunpack.c.h.b16 %v994
    %v1188 = vunpack.c.l.b16 %v995
    %v1189 = vunpack.c.h.b16 %v995
    %v1190 = vunpack.c.l.b16 %v996
    %v1191 = vunpack.c.h.b16 %v996
    %v1192 = vunpack.c.l.b16 %v997
    %v1193 = vunpack.c.h.b16 %v997
    %v1194 = vunpack.c.l.b16 %v998
    %v1195 = vunpack.c.h.b16 %v998
    %v1196 = vunpack.c.l.b16 %v999
    %v1197 = vunpack.c.h.b16 %v999
    %v1198 = vpack.c.b16 %v1072, %v1070
    %v1199 = vpack.c.b16 %v1073, %v1071
    %v1200 = vpack.c.b16 %v1076, %v1074
    %v1201 = vpack.c.b16 %v1077, %v1075
    %v1202 = vpack.c.b16 %v1080, %v1078
    %v1203 = vpack.c.b16 %v1081, %v1079
    %v1204 = vpack.c.b16 %v1084, %v1082
    %v1205 = vpack.c.b16 %v1085, %v1083
    %v1206 = vpack.c.b16 %v1088, %v1086
    %v1207 = vpack.c.b16 %v1089, %v1087
    %v1208 = vpack.c.b16 %v1092, %v1090
    %v1209 = vpack.c.b16 %v1093, %v1091
    %v1210 = vpack.c.b16 %v1096, %v1094
    %v1211 = vpack.c.b16 %v1097, %v1095
    %v1212 = vpack.c.b16 %v1100, %v1098
    %v1213 = vpack.c.b16 %v1101, %v1099
    %v1214 = vpack.c.b16 %v1104, %v1102
    %v1215 = vpack.c.b16 %v1105, %v1103
    %v1216 = vpack.c.b16 %v1108, %v1106
    %v1217 = vpack.c.b16 %v1109, %v1107
    %v1218 = vpack.c.b16 %v1112, %v1110
    %v1219 = vpack.c.b16 %v1113, %v1111
    %v1220 = vpack.c.b16 %v1116, %v1114
    %v1221 = vpack.c.b16 %v1117, %v1115
    %v1222 = vpack.c.b16 %v1120, %v1118
    %v1223 = vpack.c.b16 %v1121, %v1119
    %v1224 = vpack.c.b16 %v1124, %v1122
    %v1225 = vpack.c.b16 %v1125, %v1123
    %v1226 = vpack.c.b16 %v1128, %v1126
    %v1227 = vpack.c.b16 %v1129, %v1127
    %v1228 = vpack.c.b16 %v1132, %v1130
    %v1229 = vpack.c.b16 %v1133, %v1131
    %v1230 = vpack.c.b16 %v1136, %v1134
    %v1231 = vpack.c.b16 %v1137, %v1135
    %v1232 = vpack.c.b16 %v1140, %v1138
    %v1233 = vpack.c.b16 %v1141, %v1139
    %v1234 = vpack.c.b16 %v1144, %v1142
    %v1235 = vpack.c.b16 %v1145, %v1143
    %v1236 = vpack.c.b16 %v1148, %v1146
    %v1237 = vpack.c.b16 %v1149, %v1147
    %v1238 = vpack.c.b16 %v1152, %v1150
    %v1239 = vpack.c.b16 %v1153, %v1151
    %v1240 = vpack.c.b16 %v1156, %v1154
    %v1241 = vpack.c.b16 %v1157, %v1155
    %v1242 = vpack.c.b16 %v1160, %v1158
    %v1243 = vpack.c.b16 %v1161, %v1159
    %v1244 = vpack.c.b16 %v1164, %v1162
    %v1245 = vpack.c.b16 %v1165, %v1163
    %v1246 = vpack.c.b16 %v1168, %v1166
    %v1247 = vpack.c.b16 %v1169, %v1167
    %v1248 = vpack.c.b16 %v1172, %v1170
    %v1249 = vpack.c.b16 %v1173, %v1171
    %v1250 = vpack.c.b16 %v1176, %v1174
    %v1251 = vpack.c.b16 %v1177, %v1175
    %v1252 = vpack.c.b16 %v1180, %v1178
    %v1253 = vpack.c.b16 %v1181, %v1179
    %v1254 = vpack.c.b16 %v1184, %v1182
    %v1255 = vpack.c.b16 %v1185, %v1183
    %v1256 = vpack.c.b16 %v1188, %v1186
    %v1257 = vpack.c.b16 %v1189, %v1187
    %v1258 = vpack.c.b16 %v1192, %v1190
    %v1259 = vpack.c.b16 %v1193, %v1191
    %v1260 = vpack.c.b16 %v1196, %v1194
    %v1261 = vpack.c.b16 %v1197, %v1195
    %1326 = vmatpush.bf16.msra.mxu0 %v1212
    %1327 = vmatpush.bf16.msra.mxu0 %v1210
    %1328 = vmatpush.bf16.msra.mxu0 %v1208
    %1329 = vmatpush.bf16.msra.mxu0 %v1206
    %1330 = vmatpush.bf16.msra.mxu0 %v1204
    %1331 = vmatpush.bf16.msra.mxu0 %v1202
    %1332 = vmatpush.bf16.msra.mxu0 %v1200
    %1333 = vmatpush.bf16.msra.mxu0 %v1198
    %1334 = vmatmul.bf16.gmra.mxu0 %v932
    %v1335 = vpop.f32.mrf.mxu0
    %v1336 = vadd.f32 %v1002, %v1335
    %v1337 = vpop.f32.mrf.mxu0
    %1338 = vdwg.mxu0
    %1339 = vmatpush.bf16.msra.mxu0 %v1228
    %1340 = vmatpush.bf16.msra.mxu0 %v1226
    %1341 = vmatpush.bf16.msra.mxu0 %v1224
    %1342 = vmatpush.bf16.msra.mxu0 %v1222
    %1343 = vmatpush.bf16.msra.mxu0 %v1220
    %1344 = vmatpush.bf16.msra.mxu0 %v1218
    %1345 = vmatpush.bf16.msra.mxu0 %v1216
    %1346 = vmatpush.bf16.msra.mxu0 %v1214
    %1347 = vmatmul.bf16.gmra.mxu0 %v933
    %v1348 = vpop.f32.mrf.mxu0
    %v1349 = vadd.f32 %v1336, %v1348
    %v1350 = vpop.f32.mrf.mxu0
    %1351 = vdwg.mxu0
    %1352 = vmatpush.bf16.msra.mxu0 %v1244
    %1353 = vmatpush.bf16.msra.mxu0 %v1242
    %1354 = vmatpush.bf16.msra.mxu0 %v1240
    %1355 = vmatpush.bf16.msra.mxu0 %v1238
    %1356 = vmatpush.bf16.msra.mxu0 %v1236
    %1357 = vmatpush.bf16.msra.mxu0 %v1234
    %1358 = vmatpush.bf16.msra.mxu0 %v1232
    %1359 = vmatpush.bf16.msra.mxu0 %v1230
    %1360 = vmatmul.bf16.gmra.mxu0 %v934
    %v1361 = vpop.f32.mrf.mxu0
    %v1362 = vadd.f32 %v1349, %v1361
    %v1363 = vpop.f32.mrf.mxu0
    %1364 = vdwg.mxu0
    %1365 = vmatpush.bf16.msra.mxu0 %v1260
    %1366 = vmatpush.bf16.msra.mxu0 %v1258
    %1367 = vmatpush.bf16.msra.mxu0 %v1256
    %1368 = vmatpush.bf16.msra.mxu0 %v1254
    %1369 = vmatpush.bf16.msra.mxu0 %v1252
    %1370 = vmatpush.bf16.msra.mxu0 %v1250
    %1371 = vmatpush.bf16.msra.mxu0 %v1248
    %1372 = vmatpush.bf16.msra.mxu0 %v1246
    %1373 = vmatmul.bf16.gmra.mxu0 %v935
    %v1374 = vpop.f32.mrf.mxu0
    %v1375 = vadd.f32 %v1362, %v1374
    %v1376 = vpop.f32.mrf.mxu0
    %1377 = vdwg.mxu0
    %1378 = vmatpush.bf16.msra.mxu0 %v1213
    %1379 = vmatpush.bf16.msra.mxu0 %v1211
    %1380 = vmatpush.bf16.msra.mxu0 %v1209
    %1381 = vmatpush.bf16.msra.mxu0 %v1207
    %1382 = vmatpush.bf16.msra.mxu0 %v1205
    %1383 = vmatpush.bf16.msra.mxu0 %v1203
    %1384 = vmatpush.bf16.msra.mxu0 %v1201
    %1385 = vmatpush.bf16.msra.mxu0 %v1199
    %1386 = vmatmul.bf16.gmra.mxu0 %v932
    %v1387 = vpop.f32.mrf.mxu0
    %v1388 = vadd.f32 %v1003, %v1387
    %v1389 = vpop.f32.mrf.mxu0
    %1390 = vdwg.mxu0
    %1391 = vmatpush.bf16.msra.mxu0 %v1229
    %1392 = vmatpush.bf16.msra.mxu0 %v1227
    %1393 = vmatpush.bf16.msra.mxu0 %v1225
    %1394 = vmatpush.bf16.msra.mxu0 %v1223
    %1395 = vmatpush.bf16.msra.mxu0 %v1221
    %1396 = vmatpush.bf16.msra.mxu0 %v1219
    %1397 = vmatpush.bf16.msra.mxu0 %v1217
    %1398 = vmatpush.bf16.msra.mxu0 %v1215
    %1399 = vmatmul.bf16.gmra.mxu0 %v933
    %v1400 = vpop.f32.mrf.mxu0
    %v1401 = vadd.f32 %v1388, %v1400
    %v1402 = vpop.f32.mrf.mxu0
    %1403 = vdwg.mxu0
    %1404 = vmatpush.bf16.msra.mxu0 %v1245
    %1405 = vmatpush.bf16.msra.mxu0 %v1243
    %1406 = vmatpush.bf16.msra.mxu0 %v1241
    %1407 = vmatpush.bf16.msra.mxu0 %v1239
    %1408 = vmatpush.bf16.msra.mxu0 %v1237
    %1409 = vmatpush.bf16.msra.mxu0 %v1235
    %1410 = vmatpush.bf16.msra.mxu0 %v1233
    %1411 = vmatpush.bf16.msra.mxu0 %v1231
    %1412 = vmatmul.bf16.gmra.mxu0 %v934
    %v1413 = vpop.f32.mrf.mxu0
    %v1414 = vadd.f32 %v1401, %v1413
    %v1415 = vpop.f32.mrf.mxu0
    %1416 = vdwg.mxu0
    %1417 = vmatpush.bf16.msra.mxu0 %v1261
    %1418 = vmatpush.bf16.msra.mxu0 %v1259
    %1419 = vmatpush.bf16.msra.mxu0 %v1257
    %1420 = vmatpush.bf16.msra.mxu0 %v1255
    %1421 = vmatpush.bf16.msra.mxu0 %v1253
    %1422 = vmatpush.bf16.msra.mxu0 %v1251
    %1423 = vmatpush.bf16.msra.mxu0 %v1249
    %1424 = vmatpush.bf16.msra.mxu0 %v1247
    %1425 = vmatmul.bf16.gmra.mxu0 %v935
    %v1426 = vpop.f32.mrf.mxu0
    %v1427 = vadd.f32 %v1414, %v1426
    %v1428 = vpop.f32.mrf.mxu0
    %1429 = vdwg.mxu0
    %vm1430 = vcmask 1043456
    %v1431 = vsel %vm1430, %v1375, 0.0
    %v1432 = vrot.slane %v1431, 4
    %v1433 = vadd.f32 %v1431, %v1432
    %v1434 = vrot.slane %v1433, 2
    %v1435 = vadd.f32 %v1433, %v1434
    %v1436 = vrot.slane %v1435, 1
    %v1437 = vadd.f32 %v1435, %v1436
    %vm1438 = vcmask 519168
    %v1439 = vsel %vm1438, %v1427, 0.0
    %v1440 = vrot.slane %v1439, 4
    %v1441 = vadd.f32 %v1439, %v1440
    %v1442 = vrot.slane %v1441, 2
    %v1443 = vadd.f32 %v1441, %v1442
    %v1444 = vrot.slane %v1443, 1
    %v1445 = vadd.f32 %v1443, %v1444
    %v1446 = vrcp.pop 4.0
    %v1447 = vmul.f32 4.0, %v1446
    %v1448 = vsub.f32 1.0, %v1447
    %v1449 = vmul.f32 %v1446, %v1448
    %v1450 = vadd.f32 %v1446, %v1449
    %vm1451 = vweird.f32 %v1446
    %v1452 = vsel %vm1451, %v1446, %v1450
    %v1453 = vmul.f32 %v1437, %v1452
    %v1454 = vmul.f32 %v1445, %v1452
    %v1455 = vmul.f32 %v1375, %v1375
    %v1456 = vmul.f32 %v1427, %v1427
    %v1457 = vsel %vm1430, %v1455, 0.0
    %v1458 = vrot.slane %v1457, 4
    %v1459 = vadd.f32 %v1457, %v1458
    %v1460 = vrot.slane %v1459, 2
    %v1461 = vadd.f32 %v1459, %v1460
    %v1462 = vrot.slane %v1461, 1
    %v1463 = vadd.f32 %v1461, %v1462
    %v1464 = vsel %vm1438, %v1456, 0.0
    %v1465 = vrot.slane %v1464, 4
    %v1466 = vadd.f32 %v1464, %v1465
    %v1467 = vrot.slane %v1466, 2
    %v1468 = vadd.f32 %v1466, %v1467
    %v1469 = vrot.slane %v1468, 1
    %v1470 = vadd.f32 %v1468, %v1469
    %v1471 = vmul.f32 %v1463, %v1452
    %v1472 = vmul.f32 %v1470, %v1452
    %v1473 = vmul.f32 %v1453, %v1453
    %v1474 = vmul.f32 %v1454, %v1454
    %v1475 = vsub.f32 %v1471, %v1473
    %v1476 = vsub.f32 %v1472, %v1474
    %s1477 = scalar_lea.vmem %s4, 1
    %v1478 = vld [vmem:[%s1477] ss:$4 sm:$0x3]
    %v1479 = vadd.f32 %v1475, 1e-05
    %v1480 = vadd.f32 %v1476, 1e-05
    %v1481 = vrsqrt.pop %v1479
    %v1482 = vmul.f32 %v1481, %v1479
    %v1483 = vmul.f32 %v1482, %v1481
    %v1484 = vmul.f32 0.5, %v1483
    %v1485 = vsub.f32 1.5, %v1484
    %v1486 = vmul.f32 %v1481, %v1485
    %vm1487 = vweird.f32 %v1479
    %vm1488 = vweird.f32 %v1481
    %vm1489 = vmor %vm1487, %vm1488
    %v1490 = vsel %vm1489, %v1481, %v1486
    %v1491 = vrsqrt.pop %v1480
    %v1492 = vmul.f32 %v1491, %v1480
    %v1493 = vmul.f32 %v1492, %v1491
    %v1494 = vmul.f32 0.5, %v1493
    %v1495 = vsub.f32 1.5, %v1494
    %v1496 = vmul.f32 %v1491, %v1495
    %vm1497 = vweird.f32 %v1480
    %vm1498 = vweird.f32 %v1491
    %vm1499 = vmor %vm1497, %vm1498
    %v1500 = vsel %vm1499, %v1491, %v1496
    %v1503 = vrot.slane %v1500, 7
    %vm1504 = vcmask 1040384
    %v1505 = vsel %vm1504, %v1490, %v1503
    %v1507 = vmul.f32 %v1478, %v1505
    %s1508 = scalar_lea.vmem %s4, 2
    %v1509 = vld [vmem:[%s1508] ss:$4 sm:$0x3]
    %v1511 = vperm.slane %v1507, 0
    %v1512 = vperm.slane %v1507, 1
    %v1515 = vmul.f32 %v1453, %v1511
    %v1516 = vmul.f32 %v1454, %v1512
    %v1519 = vrot.slane %v1516, 7
    %v1520 = vsel %vm1504, %v1515, %v1519
    %v1522 = vsub.f32 %v1509, %v1520
    %v1523 = vmul.f32 %v1375, %v1511
    %v1524 = vmul.f32 %v1427, %v1512
    %v1526 = vperm.slane %v1522, 0
    %v1527 = vperm.slane %v1522, 1
    %v1530 = vadd.f32 %v1523, %v1526
    %v1531 = vadd.f32 %v1524, %v1527
    %v1532 = vmax.f32 %v1530, 0.0
    %v1533 = vmax.f32 %v1531, 0.0
    %v1534 = vpack.c.bf16 %v1532, %v1532
    %v1535 = vpack.c.bf16 %v1533, %v1533
    %v1536 = vld [vmem:[#allocation7] sm:$0xf]
    %v1537 = vld [vmem:[#allocation7 + $0x4] sm:$0xf]
    %v1538 = vld [vmem:[#allocation7 + $0x8] sm:$0xf]
    %v1539 = vld [vmem:[#allocation7 + $0xc] sm:$0xf]
    %v1540 = vld [vmem:[#allocation7 + $0x10] sm:$0xf]
    %v1541 = vld [vmem:[#allocation7 + $0x14] sm:$0xf]
    %v1542 = vld [vmem:[#allocation7 + $0x18] sm:$0xf]
    %v1543 = vld [vmem:[#allocation7 + $0x1c] sm:$0xf]
    %v1544 = vld [vmem:[#allocation7 + $0x20] sm:$0xf]
    %v1545 = vld [vmem:[#allocation7 + $0x24] sm:$0xf]
    %v1546 = vld [vmem:[#allocation7 + $0x28] sm:$0xf]
    %v1547 = vld [vmem:[#allocation7 + $0x2c] sm:$0xf]
    %v1548 = vld [vmem:[#allocation7 + $0x30] sm:$0xf]
    %v1549 = vld [vmem:[#allocation7 + $0x34] sm:$0xf]
    %v1550 = vld [vmem:[#allocation7 + $0x38] sm:$0xf]
    %v1551 = vld [vmem:[#allocation7 + $0x3c] sm:$0xf]
    %v1552 = vld [vmem:[#allocation7 + $0x40] sm:$0xf]
    %v1553 = vld [vmem:[#allocation7 + $0x44] sm:$0xf]
    %v1554 = vld [vmem:[#allocation7 + $0x48] sm:$0xf]
    %v1555 = vld [vmem:[#allocation7 + $0x4c] sm:$0xf]
    %v1556 = vld [vmem:[#allocation7 + $0x50] sm:$0xf]
    %v1557 = vld [vmem:[#allocation7 + $0x54] sm:$0xf]
    %v1558 = vld [vmem:[#allocation7 + $0x58] sm:$0xf]
    %v1559 = vld [vmem:[#allocation7 + $0x5c] sm:$0xf]
    %v1560 = vld [vmem:[%s6] sm:$0x1]
    %v1561 = vperm.slane %v1560, 0
    %v1586 = vunpack.c.l.b16 %v1536
    %v1587 = vunpack.c.l.b16 %v1537
    %v1588 = vunpack.c.l.b16 %v1538
    %v1589 = vunpack.c.l.b16 %v1539
    %v1590 = vunpack.c.l.b16 %v1540
    %v1591 = vunpack.c.l.b16 %v1541
    %v1592 = vunpack.c.l.b16 %v1542
    %v1593 = vunpack.c.l.b16 %v1543
    %v1594 = vunpack.c.l.b16 %v1544
    %v1595 = vunpack.c.l.b16 %v1545
    %v1596 = vunpack.c.l.b16 %v1546
    %v1597 = vunpack.c.l.b16 %v1547
    %v1598 = vunpack.c.l.b16 %v1548
    %v1599 = vunpack.c.l.b16 %v1549
    %v1600 = vunpack.c.l.b16 %v1550
    %v1601 = vunpack.c.l.b16 %v1551
    %v1602 = vunpack.c.l.b16 %v1552
    %v1603 = vunpack.c.l.b16 %v1553
    %v1604 = vunpack.c.l.b16 %v1554
    %v1605 = vunpack.c.l.b16 %v1555
    %v1606 = vunpack.c.l.b16 %v1556
    %v1607 = vunpack.c.l.b16 %v1557
    %v1608 = vunpack.c.l.b16 %v1558
    %v1609 = vunpack.c.l.b16 %v1559
    %v1610 = vpack.c.b16 %v1587, %v1586
    %v1611 = vpack.c.b16 %v1589, %v1588
    %v1612 = vpack.c.b16 %v1591, %v1590
    %v1613 = vpack.c.b16 %v1593, %v1592
    %v1614 = vpack.c.b16 %v1595, %v1594
    %v1615 = vpack.c.b16 %v1597, %v1596
    %v1616 = vpack.c.b16 %v1599, %v1598
    %v1617 = vpack.c.b16 %v1601, %v1600
    %v1618 = vpack.c.b16 %v1603, %v1602
    %v1619 = vpack.c.b16 %v1605, %v1604
    %v1620 = vpack.c.b16 %v1607, %v1606
    %v1621 = vpack.c.b16 %v1609, %v1608
    %vm1634 = vcmask 523264
    %v1636 = vsel %vm1634, %v1535, 0
    %1638 = vmatpush.bf16.msra.mxu0 %v1617
    %1639 = vmatpush.bf16.msra.mxu0 %v1616
    %1640 = vmatpush.bf16.msra.mxu0 %v1615
    %1641 = vmatpush.bf16.msra.mxu0 %v1614
    %1642 = vmatpush.bf16.msra.mxu0 %v1613
    %1643 = vmatpush.bf16.msra.mxu0 %v1612
    %1644 = vmatpush.bf16.msra.mxu0 %v1611
    %1645 = vmatpush.bf16.msra.mxu0 %v1610
    %1646 = vmatmul.bf16.gmra.mxu0 %v1534
    %v1647 = vpop.f32.mrf.mxu0
    %v1648 = vadd.f32 %v1561, %v1647
    %v1649 = vpop.f32.mrf.mxu0
    %1650 = vdwg.mxu0
    %1651 = vmatpush.bf16.msra.mxu0 0
    %1652 = vmatpush.bf16.msra.mxu0 0
    %1653 = vmatpush.bf16.msra.mxu0 0
    %1654 = vmatpush.bf16.msra.mxu0 0
    %1655 = vmatpush.bf16.msra.mxu0 %v1621
    %1656 = vmatpush.bf16.msra.mxu0 %v1620
    %1657 = vmatpush.bf16.msra.mxu0 %v1619
    %1658 = vmatpush.bf16.msra.mxu0 %v1618
    %1659 = vmatmul.bf16.gmra.mxu0 %v1636
    %v1660 = vpop.f32.mrf.mxu0
    %v1661 = vadd.f32 %v1648, %v1660
    %v1662 = vpop.f32.mrf.mxu0
    %1663 = vdwg.mxu0
    %v1664 = vsel %vm1430, %v1661, 0.0
    %v1665 = vrot.slane %v1664, 4
    %v1666 = vadd.f32 %v1664, %v1665
    %v1667 = vrot.slane %v1666, 2
    %v1668 = vadd.f32 %v1666, %v1667
    %v1669 = vrot.slane %v1668, 1
    %v1670 = vadd.f32 %v1668, %v1669
    %v1671 = vmul.f32 %v1670, %v1452
    %v1672 = vmul.f32 %v1661, %v1661
    %v1673 = vsel %vm1430, %v1672, 0.0
    %v1674 = vrot.slane %v1673, 4
    %v1675 = vadd.f32 %v1673, %v1674
    %v1676 = vrot.slane %v1675, 2
    %v1677 = vadd.f32 %v1675, %v1676
    %v1678 = vrot.slane %v1677, 1
    %v1679 = vadd.f32 %v1677, %v1678
    %v1680 = vmul.f32 %v1679, %v1452
    %v1681 = vmul.f32 %v1671, %v1671
    %v1682 = vsub.f32 %v1680, %v1681
    %v1683 = vld [vmem:[%s6 + $0x1] sm:$0x1]
    %v1684 = vadd.f32 %v1682, 1e-05
    %v1685 = vrsqrt.pop %v1684
    %v1686 = vmul.f32 %v1685, %v1684
    %v1687 = vmul.f32 %v1686, %v1685
    %v1688 = vmul.f32 0.5, %v1687
    %v1689 = vsub.f32 1.5, %v1688
    %v1690 = vmul.f32 %v1685, %v1689
    %vm1691 = vweird.f32 %v1684
    %vm1692 = vweird.f32 %v1685
    %vm1693 = vmor %vm1691, %vm1692
    %v1694 = vsel %vm1693, %v1685, %v1690
    %v1695 = vmul.f32 %v1683, %v1694
    %v1696 = vld [vmem:[%s6 + $0x2] sm:$0x1]
    %v1697 = vmul.f32 %v1671, %v1695
    %v1698 = vsub.f32 %v1696, %v1697
    %v1699 = vperm.slane %v1695, 0
    %v1700 = vmul.f32 %v1661, %v1699
    %v1701 = vperm.slane %v1698, 0
    %v1702 = vadd.f32 %v1700, %v1701
    %v1703 = vmax.f32 %v1702, 0.0
    %v1704 = vpack.c.bf16 %v1703, %v1703
    %v1705 = vld [vmem:[#allocation8] sm:$0xf]
    %v1706 = vld [vmem:[#allocation8 + $0x4] sm:$0xf]
    %v1707 = vld [vmem:[#allocation8 + $0x8] sm:$0xf]
    %v1708 = vld [vmem:[#allocation8 + $0xc] sm:$0xf]
    %v1709 = vld [vmem:[#allocation8 + $0x10] sm:$0xf]
    %v1710 = vld [vmem:[#allocation8 + $0x14] sm:$0xf]
    %v1711 = vld [vmem:[#allocation8 + $0x18] sm:$0xf]
    %v1712 = vld [vmem:[#allocation8 + $0x1c] sm:$0xf]
    %v1713 = vld [vmem:[#allocation8 + $0x20] sm:$0xf]
    %v1714 = vld [vmem:[#allocation8 + $0x24] sm:$0xf]
    %v1715 = vld [vmem:[#allocation8 + $0x28] sm:$0xf]
    %v1716 = vld [vmem:[#allocation8 + $0x2c] sm:$0xf]
    %v1717 = vld [vmem:[#allocation8 + $0x30] sm:$0xf]
    %v1718 = vld [vmem:[#allocation8 + $0x34] sm:$0xf]
    %v1719 = vld [vmem:[#allocation8 + $0x38] sm:$0xf]
    %v1720 = vld [vmem:[#allocation8 + $0x3c] sm:$0xf]
    %v1721 = vld [vmem:[%s8] sm:$0x1]
    %v1723 = vperm.slane %v1721, 0
    %v1741 = vunpack.c.l.b16 %v1705
    %v1742 = vunpack.c.l.b16 %v1706
    %v1743 = vunpack.c.l.b16 %v1707
    %v1744 = vunpack.c.l.b16 %v1708
    %v1745 = vunpack.c.l.b16 %v1709
    %v1746 = vunpack.c.l.b16 %v1710
    %v1747 = vunpack.c.l.b16 %v1711
    %v1748 = vunpack.c.l.b16 %v1712
    %v1749 = vunpack.c.l.b16 %v1713
    %v1750 = vunpack.c.l.b16 %v1714
    %v1751 = vunpack.c.l.b16 %v1715
    %v1752 = vunpack.c.l.b16 %v1716
    %v1753 = vunpack.c.l.b16 %v1717
    %v1754 = vunpack.c.l.b16 %v1718
    %v1755 = vunpack.c.l.b16 %v1719
    %v1756 = vunpack.c.l.b16 %v1720
    %v1757 = vpack.c.b16 %v1742, %v1741
    %v1758 = vpack.c.b16 %v1744, %v1743
    %v1759 = vpack.c.b16 %v1746, %v1745
    %v1760 = vpack.c.b16 %v1748, %v1747
    %v1761 = vpack.c.b16 %v1750, %v1749
    %v1762 = vpack.c.b16 %v1752, %v1751
    %v1763 = vpack.c.b16 %v1754, %v1753
    %v1764 = vpack.c.b16 %v1756, %v1755
    %1773 = vmatpush.bf16.msra.mxu0 %v1764
    %1774 = vmatpush.bf16.msra.mxu0 %v1763
    %1775 = vmatpush.bf16.msra.mxu0 %v1762
    %1776 = vmatpush.bf16.msra.mxu0 %v1761
    %1777 = vmatpush.bf16.msra.mxu0 %v1760
    %1778 = vmatpush.bf16.msra.mxu0 %v1759
    %1779 = vmatpush.bf16.msra.mxu0 %v1758
    %1780 = vmatpush.bf16.msra.mxu0 %v1757
    %1781 = vmatmul.bf16.gmra.mxu0 %v1704
    %v1782 = vpop.f32.mrf.mxu0
    %v1783 = vadd.f32 %v1723, %v1782
    %v1784 = vpop.f32.mrf.mxu0
    %1785 = vdwg.mxu0
    %vm1786 = vcmask 19456
    %v1787 = vsel %vm1786, %v1783, -inf
    %1788 = vmax.xlane.f32.xlu0 %v1787
    %v1789 = vpop.xlane.xlu0 %1788
    %v1790 = vsub.f32 %v1783, %v1789
    %v1791 = vmul.f32 %v1790, 1.442695
    %v1792 = vpow.pop %v1791
    %v1793 = vsel %vm1786, %v1792, 0.0
    %1794 = vadd.xlane.f32.xlu0 %v1793
    %v1795 = vpop.xlane.xlu0 %1794
    %v1796 = vrcp.pop %v1795
    %v1797 = vmul.f32 %v1795, %v1796
    %v1798 = vsub.f32 1.0, %v1797
    %v1799 = vmul.f32 %v1796, %v1798
    %v1800 = vadd.f32 %v1796, %v1799
    %vm1801 = vweird.f32 %v1795
    %vm1802 = vweird.f32 %v1796
    %vm1803 = vmor %vm1801, %vm1802
    %v1804 = vsel %vm1803, %v1796, %v1800
    %v1805 = vand.u32 2147483647, %v1795
    %vm1806 = vcmp.eq.f32.partialorder %v1805, 8.507059e+37
    %v1807 = vand.u32 %v1795, 2147483648
    %v1808 = vor.u32 1.1754944e-38, %v1807
    %v1809 = vsel %vm1806, %v1808, %v1804
    %v1810 = vmul.f32 %v1792, %v1809
    %1811 = vst.msk [vmem:[#allocation10] sm:$0xf] %vm1786, %v1810
    %vm1812 = vcmask 3072
    %1813 = vst.msk [vmem:[%s10] sm:$0xf] %vm1812, 1.0
    // Predicated region
    $region54: #{_lambda_.1} parent=1 // pred_check
      _
    $region55: #{_lambda_.1} parent=1 // pred_check_branch
      %1815 = sbr.rel (0) target = $region57
    $region56: #{_lambda_.1} parent=1 // pred_region
      %1817 = vsyncadd [#allocation4], 0
      %s1819 = sshll.u32 [#allocation10], 4
      %s1820 = int_to_ptr.vmem [resolvable:$true] %s1819
      %s1821 = sshll.u32 %s9, 4
      %s1822 = int_to_ptr.hbm [resolvable:$true] %s1821
      %1824 = dma.vmem_to_hbm [thread:$0]  %s1820, 64, %s1822, [#allocation4]
    $region57: #{_lambda_.1} parent=1 // pred_fallthru
      _
    // Predicated region
    $region58: #{_lambda_.1} parent=1 // pred_check
      _
    $region59: #{_lambda_.1} parent=1 // pred_check_branch
      %1826 = sbr.rel (0) target = $region61
    $region60: #{_lambda_.1} parent=1 // pred_region
      _
    $region61: #{_lambda_.1} parent=1 // pred_fallthru
      _
    // Predicated region
    $region62: #{_lambda_.1} parent=1 // pred_check
      _
    $region63: #{_lambda_.1} parent=1 // pred_check_branch
      %1828 = sbr.rel (0) target = $region65
    $region64: #{_lambda_.1} parent=1 // pred_region
      %1830 = dma.done [#allocation4], 64
    $region65: #{_lambda_.1} parent=1 // pred_fallthru
      _
    // Predicated region
    $region66: #{_lambda_.1} parent=1 // pred_check
      _
    $region67: #{_lambda_.1} parent=1 // pred_check_branch
      %1832 = sbr.rel (0) target = $region69
    $region68: #{_lambda_.1} parent=1 // pred_region
      _
    $region69: #{_lambda_.1} parent=1 // pred_fallthru
      _
    %1833 = vsyncpa [#allocation3], 1
    %1834 = vsyncpa [#allocation6], 1
    %1835 = vsyncpa [#allocation9], 1
    %1836 = vsyncpa [#allocation4], 1

</llo_original>
